<compile_context>
chip_gen: v5e
topology: v5e:2x2
jax: 0.10.0
libtpu: 0.0.40
codegen_flags: <defaults>
</compile_context>

<pallas_src>
import functools

import jax
import jax.numpy as jnp
from jax import lax
from jax.experimental import pallas as pl
from jax.experimental.pallas import tpu as pltpu


# --------------------------------------------------------------------------- #
# Fused kernel: QKV projection + MHSA + output projection (one batch / step)
# --------------------------------------------------------------------------- #
def _fused_attention_kernel(x_ref, wq_ref, wk_ref, wv_ref, wp_ref, b_ref,
                            o_ref, y_acc, *, num_heads):
    # x_ref : [1, N, C]    current batch (input dtype)
    # wq_ref: [H, C, Dh]   bf16, head-major, softmax scale pre-folded
    # wk_ref: [H, C, Dh]   bf16, head-major
    # wv_ref: [H, C, Dh]   bf16, head-major
    # wp_ref: [H, Dh, C]   bf16, head-major output projection
    # b_ref : [1, C]       f32 output-projection bias
    # o_ref : [1, N, C]
    # y_acc : [N, C]       f32 scratch, accumulates sum_h ctx_h @ Wp_h
    x = x_ref[0].astype(jnp.bfloat16)                    # bf16 MXU operand [N, C]
    y_acc[...] = jnp.zeros_like(y_acc)                   # fresh per grid step

    def head_body(h, carry):
        # Leading-axis ref views: zero-cost, no Dh-wide lane slicing.
        wq = wq_ref[h]                                   # [C, Dh]
        wk = wk_ref[h]
        wv = wv_ref[h]

        # Per-head projections: bf16 operands, f32 MXU accumulation.
        q = jnp.dot(x, wq, preferred_element_type=jnp.float32)   # [N, Dh]
        k = jnp.dot(x, wk, preferred_element_type=jnp.float32)
        v = jnp.dot(x, wv, preferred_element_type=jnp.float32)

        # q @ k^T contracting last dims (no XLU transpose); bf16 in, f32 acc.
        s = lax.dot_general(q.astype(jnp.bfloat16), k.astype(jnp.bfloat16),
                            (((1,), (1,)), ((), ())),
                            preferred_element_type=jnp.float32)   # [N, N]

        # Numerically stable softmax; all elementwise math stays f32.
        # Exact reciprocal (approx=False) per correctness feedback — it still
        # issues on the EUP slot, off the VPU critical path.
        s = s - jnp.max(s, axis=-1, keepdims=True)
        p = jnp.exp(s)
        p = p * pl.reciprocal(jnp.sum(p, axis=-1, keepdims=True), approx=False)

        # attn @ v : bf16 operands, f32 accumulation.
        ctx = jnp.dot(p.astype(jnp.bfloat16), v.astype(jnp.bfloat16),
                      preferred_element_type=jnp.float32)         # [N, Dh]

        # Head merge + output projection in one step: y += ctx_h @ Wp_h.
        y_acc[...] += jnp.dot(ctx.astype(jnp.bfloat16), wp_ref[h],
                              preferred_element_type=jnp.float32)  # [N, C]
        return carry

    # Bounded live ranges + visible loop for the LLO scheduler.
    lax.fori_loop(0, num_heads, head_body, 0, unroll=True)

    # Bias add in f32, single full-tile store of the result.
    o_ref[0] = (y_acc[...] + b_ref[...]).astype(o_ref.dtype)


# --------------------------------------------------------------------------- #
# Wrapper
# --------------------------------------------------------------------------- #
def attention_forward(x, params, num_heads):
    """Mirrors Attention.forward.  x: [B, N, C] -> [B, N, C]."""
    B, N, C = x.shape
    H = num_heads
    assert C % H == 0, "embed_dim must be divisible by num_heads"
    Dh = C // H
    scale = Dh ** (-0.5)

    # --- reorganize weights head-major, cast to bf16 (resident in VMEM) ---
    # w_qkv: [C, 3C] with output columns ordered (3, H, Dh)  -> [3, H, C, Dh]
    w_qkv_hm = params["w_qkv"].reshape(C, 3, H, Dh).transpose(1, 2, 0, 3)
    wq = (w_qkv_hm[0] * scale).astype(jnp.bfloat16)   # fold softmax scale into Wq
    wk = w_qkv_hm[1].astype(jnp.bfloat16)             # [H, C, Dh]
    wv = w_qkv_hm[2].astype(jnp.bfloat16)             # [H, C, Dh]
    # w_proj: [C, C] = [H*Dh, C]  -> head-major [H, Dh, C]
    wp = params["w_proj"].reshape(H, Dh, C).astype(jnp.bfloat16)
    b_proj = params["b_proj"].reshape(1, C).astype(jnp.float32)

    kernel = functools.partial(_fused_attention_kernel, num_heads=H)

    # Advisory cost hint for XLA's scheduler around the fused custom call.
    flops = 2 * B * (N * C * 3 * C            # qkv projection
                     + 2 * H * N * N * Dh     # q@k^T and attn@v
                     + N * C * C)             # output projection
    transcendentals = B * H * N * N           # exp in softmax
    bytes_accessed = (x.size * x.dtype.itemsize
                      + (wq.size + wk.size + wv.size + wp.size) * 2
                      + b_proj.size * 4
                      + B * N * C * x.dtype.itemsize)
    cost = pl.CostEstimate(flops=flops, transcendentals=transcendentals,
                           bytes_accessed=bytes_accessed)

    return pl.pallas_call(
        kernel,
        out_shape=jax.ShapeDtypeStruct((B, N, C), x.dtype),
        grid_spec=pltpu.PrefetchScalarGridSpec(
            num_scalar_prefetch=0,
            grid=(B,),
            in_specs=[
                pl.BlockSpec((1, N, C), lambda b: (b, 0, 0)),     # x (per batch)
                pl.BlockSpec((H, C, Dh), lambda b: (0, 0, 0)),    # Wq (resident)
                pl.BlockSpec((H, C, Dh), lambda b: (0, 0, 0)),    # Wk (resident)
                pl.BlockSpec((H, C, Dh), lambda b: (0, 0, 0)),    # Wv (resident)
                pl.BlockSpec((H, Dh, C), lambda b: (0, 0, 0)),    # Wp (resident)
                pl.BlockSpec((1, C), lambda b: (0, 0)),           # bias (resident)
            ],
            out_specs=pl.BlockSpec((1, N, C), lambda b: (b, 0, 0)),
            scratch_shapes=[
                pltpu.VMEM((N, C), jnp.float32),                  # y accumulator
            ],
        ),
        compiler_params=pltpu.CompilerParams(
            dimension_semantics=("parallel",),
        ),
        cost_estimate=cost,
    )(x, wq, wk, wv, wp, b_proj)


# --------------------------------------------------------------------------- #
# Pure-JAX reference (for correctness check)
# --------------------------------------------------------------------------- #
def attention_reference(x, params, num_heads):
    B, N, C = x.shape
    H = num_heads
    Dh = C // H
    scale = Dh ** (-0.5)
    qkv = x @ params["w_qkv"]
    qkv = qkv.reshape(B, N, 3, H, Dh).transpose(2, 0, 3, 1, 4)
    q, k, v = qkv[0], qkv[1], qkv[2]
    attn = jnp.einsum("bhqd,bhkd->bhqk", q, k) * scale
    attn = jax.nn.softmax(attn, axis=-1)
    o = jnp.einsum("bhqk,bhkd->bhqd", attn, v)
    o = o.transpose(0, 2, 1, 3).reshape(B, N, C)
    return o @ params["w_proj"] + params["b_proj"]


# --------------------------------------------------------------------------- #
# Main
# --------------------------------------------------------------------------- #
if __name__ == "__main__":
    # Small shapes consistent with the module: [batch, num_patches, embed_dim]
    B, N, C = 2, 8, 32
    num_heads = 8

    key = jax.random.PRNGKey(0)
    kx, kqkv, kp, kb = jax.random.split(key, 4)

    x = jax.random.normal(kx, (B, N, C), dtype=jnp.float32)

    # Deterministic parameter init (stored as [in, out]); qkv has no bias
    # (matches qkv_bias=False default).
    params = {
        "w_qkv": jax.random.normal(kqkv, (C, 3 * C), dtype=jnp.float32) * 0.02,
        "w_proj": jax.random.normal(kp, (C, C), dtype=jnp.float32) * 0.02,
        "b_proj": jax.random.normal(kb, (C,), dtype=jnp.float32) * 0.02,
    }

    out = attention_forward(x, params, num_heads)
    out = jax.block_until_ready(out)

    ref = attention_reference(x, params, num_heads)
    assert out.shape == (B, N, C)
    # Tolerance accounts for bf16 MXU operands (f32 accumulate) in the kernel
    # vs the all-f32 reference.
    assert jnp.allclose(out, ref, atol=1e-2, rtol=1e-2), "mismatch vs reference"

    print("KERNEL_OK")
</pallas_src>

<mosaic_0001>
module attributes {stable_mosaic.version = 11 : i64} {
  func.func @_fused_attention_kernel(%arg0: i32, %arg1: memref<1x8x32xf32, #tpu.memory_space<vmem>>, %arg2: memref<8x32x4xbf16, #tpu.memory_space<vmem>>, %arg3: memref<8x32x4xbf16, #tpu.memory_space<vmem>>, %arg4: memref<8x32x4xbf16, #tpu.memory_space<vmem>>, %arg5: memref<8x4x32xbf16, #tpu.memory_space<vmem>>, %arg6: memref<1x32xf32, #tpu.memory_space<vmem>>, %arg7: memref<1x8x32xf32, #tpu.memory_space<vmem>>, %arg8: memref<8x32xf32, #tpu.memory_space<vmem>>) attributes {dimension_semantics = [#tpu.dimension_semantics<parallel>], iteration_bounds = array<i64: 2>, scalar_prefetch = 0 : i64, scratch_operands = 1 : i64, tpu.core_type = #tpu.core_type<tc>, window_params = [{transform_indices = @transform_0, window_bounds = array<i64: 1, 8, 32>}, {pipeline_mode = #tpu.pipeline_mode<synchronous>, transform_indices = @transform_1, window_bounds = array<i64: 8, 32, 4>}, {pipeline_mode = #tpu.pipeline_mode<synchronous>, transform_indices = @transform_2, window_bounds = array<i64: 8, 32, 4>}, {pipeline_mode = #tpu.pipeline_mode<synchronous>, transform_indices = @transform_3, window_bounds = array<i64: 8, 32, 4>}, {pipeline_mode = #tpu.pipeline_mode<synchronous>, transform_indices = @transform_4, window_bounds = array<i64: 8, 4, 32>}, {pipeline_mode = #tpu.pipeline_mode<synchronous>, transform_indices = @transform_5, window_bounds = array<i64: 1, 32>}, {transform_indices = @transform_6, window_bounds = array<i64: 1, 8, 32>}]} {
    %c0 = arith.constant 0 : index
    %c0_0 = arith.constant 0 : index
    %c0_1 = arith.constant 0 : index
    %0 = vector.load %arg1[%c0, %c0_0, %c0_1] : memref<1x8x32xf32, #tpu.memory_space<vmem>>, vector<1x8x32xf32>
    %1 = vector.shape_cast %0 : vector<1x8x32xf32> to vector<8x32xf32>
    %2 = arith.truncf %1 : vector<8x32xf32> to vector<8x32xbf16>
    %cst = arith.constant 0.000000e+00 : f32
    %3 = vector.broadcast %cst : f32 to vector<8x32xf32>
    %c0_2 = arith.constant 0 : index
    %c0_3 = arith.constant 0 : index
    %4 = vector.load %arg8[%c0_2, %c0_3] : memref<8x32xf32, #tpu.memory_space<vmem>>, vector<8x32xf32>
    tpu.vector_store %arg8[%c0_2, %c0_3], %3 {strides = array<i32>} : memref<8x32xf32, #tpu.memory_space<vmem>>, vector<8x32xf32>,
    %c0_i32 = arith.constant 0 : i32
    %5 = arith.index_cast %c0_i32 : i32 to index
    %c0_4 = arith.constant 0 : index
    %c0_5 = arith.constant 0 : index
    %6 = vector.load %arg2[%5, %c0_4, %c0_5] : memref<8x32x4xbf16, #tpu.memory_space<vmem>>, vector<1x32x4xbf16>
    %7 = vector.shape_cast %6 : vector<1x32x4xbf16> to vector<32x4xbf16>
    %8 = arith.index_cast %c0_i32 : i32 to index
    %c0_6 = arith.constant 0 : index
    %c0_7 = arith.constant 0 : index
    %9 = vector.load %arg3[%8, %c0_6, %c0_7] : memref<8x32x4xbf16, #tpu.memory_space<vmem>>, vector<1x32x4xbf16>
    %10 = vector.shape_cast %9 : vector<1x32x4xbf16> to vector<32x4xbf16>
    %11 = arith.index_cast %c0_i32 : i32 to index
    %c0_8 = arith.constant 0 : index
    %c0_9 = arith.constant 0 : index
    %12 = vector.load %arg4[%11, %c0_8, %c0_9] : memref<8x32x4xbf16, #tpu.memory_space<vmem>>, vector<1x32x4xbf16>
    %13 = vector.shape_cast %12 : vector<1x32x4xbf16> to vector<32x4xbf16>
    %cst_10 = arith.constant dense<0.000000e+00> : vector<8x4xf32>
    %14 = tpu.matmul %2, %7, %cst_10 {dimension_numbers = #tpu.dot_dimension_numbers<[1], [0], [0], [1], [0, 0, 1, 1], [], []>} : vector<8x32xbf16>, vector<32x4xbf16>, vector<8x4xf32> -> vector<8x4xf32>
    %cst_11 = arith.constant dense<0.000000e+00> : vector<8x4xf32>
    %15 = tpu.matmul %2, %10, %cst_11 {dimension_numbers = #tpu.dot_dimension_numbers<[1], [0], [0], [1], [0, 0, 1, 1], [], []>} : vector<8x32xbf16>, vector<32x4xbf16>, vector<8x4xf32> -> vector<8x4xf32>
    %cst_12 = arith.constant dense<0.000000e+00> : vector<8x4xf32>
    %16 = tpu.matmul %2, %13, %cst_12 {dimension_numbers = #tpu.dot_dimension_numbers<[1], [0], [0], [1], [0, 0, 1, 1], [], []>} : vector<8x32xbf16>, vector<32x4xbf16>, vector<8x4xf32> -> vector<8x4xf32>
    %17 = arith.truncf %14 : vector<8x4xf32> to vector<8x4xbf16>
    %18 = arith.truncf %15 : vector<8x4xf32> to vector<8x4xbf16>
    %cst_13 = arith.constant dense<0.000000e+00> : vector<8x8xf32>
    %19 = tpu.matmul %17, %18, %cst_13 {dimension_numbers = #tpu.dot_dimension_numbers<[1], [1], [0], [0], [0, 0, 1, 0], [], []>} : vector<8x4xbf16>, vector<8x4xbf16>, vector<8x8xf32> -> vector<8x8xf32>
    %cst_14 = arith.constant dense<0xFF800000> : vector<8xf32>
    %20 = vector.multi_reduction <maximumf>, %19, %cst_14 [1] : vector<8x8xf32> to vector<8xf32>
    %21 = vector.shape_cast %20 : vector<8xf32> to vector<8x1xf32>
    %22 = vector.broadcast %21 : vector<8x1xf32> to vector<8x8xf32>
    %23 = arith.subf %19, %22 : vector<8x8xf32>
    %24 = math.exp %23 : vector<8x8xf32>
    %cst_15 = arith.constant dense<0.000000e+00> : vector<8xf32>
    %25 = vector.multi_reduction <add>, %24, %cst_15 [1] : vector<8x8xf32> to vector<8xf32>
    %26 = vector.shape_cast %25 : vector<8xf32> to vector<8x1xf32>
    %27 = tpu.reciprocal %26 : vector<8x1xf32> -> vector<8x1xf32>
    %28 = vector.broadcast %27 : vector<8x1xf32> to vector<8x8xf32>
    %29 = arith.mulf %24, %28 : vector<8x8xf32>
    %30 = arith.truncf %29 : vector<8x8xf32> to vector<8x8xbf16>
    %31 = arith.truncf %16 : vector<8x4xf32> to vector<8x4xbf16>
    %cst_16 = arith.constant dense<0.000000e+00> : vector<8x4xf32>
    %32 = tpu.matmul %30, %31, %cst_16 {dimension_numbers = #tpu.dot_dimension_numbers<[1], [0], [0], [1], [0, 0, 1, 1], [], []>} : vector<8x8xbf16>, vector<8x4xbf16>, vector<8x4xf32> -> vector<8x4xf32>
    %c0_17 = arith.constant 0 : index
    %c0_18 = arith.constant 0 : index
    %33 = vector.load %arg8[%c0_17, %c0_18] : memref<8x32xf32, #tpu.memory_space<vmem>>, vector<8x32xf32>
    %34 = arith.truncf %32 : vector<8x4xf32> to vector<8x4xbf16>
    %35 = arith.index_cast %c0_i32 : i32 to index
    %c0_19 = arith.constant 0 : index
    %c0_20 = arith.constant 0 : index
    %36 = vector.load %arg5[%35, %c0_19, %c0_20] : memref<8x4x32xbf16, #tpu.memory_space<vmem>>, vector<1x4x32xbf16>
    %37 = vector.shape_cast %36 : vector<1x4x32xbf16> to vector<4x32xbf16>
    %cst_21 = arith.constant dense<0.000000e+00> : vector<8x32xf32>
    %38 = tpu.matmul %34, %37, %cst_21 {dimension_numbers = #tpu.dot_dimension_numbers<[1], [0], [0], [1], [0, 0, 1, 1], [], []>} : vector<8x4xbf16>, vector<4x32xbf16>, vector<8x32xf32> -> vector<8x32xf32>
    %39 = arith.addf %33, %38 : vector<8x32xf32>
    %c0_22 = arith.constant 0 : index
    %c0_23 = arith.constant 0 : index
    %40 = vector.load %arg8[%c0_22, %c0_23] : memref<8x32xf32, #tpu.memory_space<vmem>>, vector<8x32xf32>
    tpu.vector_store %arg8[%c0_22, %c0_23], %39 {strides = array<i32>} : memref<8x32xf32, #tpu.memory_space<vmem>>, vector<8x32xf32>,
    %c1_i32 = arith.constant 1 : i32
    %41 = arith.index_cast %c1_i32 : i32 to index
    %c0_24 = arith.constant 0 : index
    %c0_25 = arith.constant 0 : index
    %42 = vector.load %arg2[%41, %c0_24, %c0_25] : memref<8x32x4xbf16, #tpu.memory_space<vmem>>, vector<1x32x4xbf16>
    %43 = vector.shape_cast %42 : vector<1x32x4xbf16> to vector<32x4xbf16>
    %44 = arith.index_cast %c1_i32 : i32 to index
    %c0_26 = arith.constant 0 : index
    %c0_27 = arith.constant 0 : index
    %45 = vector.load %arg3[%44, %c0_26, %c0_27] : memref<8x32x4xbf16, #tpu.memory_space<vmem>>, vector<1x32x4xbf16>
    %46 = vector.shape_cast %45 : vector<1x32x4xbf16> to vector<32x4xbf16>
    %47 = arith.index_cast %c1_i32 : i32 to index
    %c0_28 = arith.constant 0 : index
    %c0_29 = arith.constant 0 : index
    %48 = vector.load %arg4[%47, %c0_28, %c0_29] : memref<8x32x4xbf16, #tpu.memory_space<vmem>>, vector<1x32x4xbf16>
    %49 = vector.shape_cast %48 : vector<1x32x4xbf16> to vector<32x4xbf16>
    %cst_30 = arith.constant dense<0.000000e+00> : vector<8x4xf32>
    %50 = tpu.matmul %2, %43, %cst_30 {dimension_numbers = #tpu.dot_dimension_numbers<[1], [0], [0], [1], [0, 0, 1, 1], [], []>} : vector<8x32xbf16>, vector<32x4xbf16>, vector<8x4xf32> -> vector<8x4xf32>
    %cst_31 = arith.constant dense<0.000000e+00> : vector<8x4xf32>
    %51 = tpu.matmul %2, %46, %cst_31 {dimension_numbers = #tpu.dot_dimension_numbers<[1], [0], [0], [1], [0, 0, 1, 1], [], []>} : vector<8x32xbf16>, vector<32x4xbf16>, vector<8x4xf32> -> vector<8x4xf32>
    %cst_32 = arith.constant dense<0.000000e+00> : vector<8x4xf32>
    %52 = tpu.matmul %2, %49, %cst_32 {dimension_numbers = #tpu.dot_dimension_numbers<[1], [0], [0], [1], [0, 0, 1, 1], [], []>} : vector<8x32xbf16>, vector<32x4xbf16>, vector<8x4xf32> -> vector<8x4xf32>
    %53 = arith.truncf %50 : vector<8x4xf32> to vector<8x4xbf16>
    %54 = arith.truncf %51 : vector<8x4xf32> to vector<8x4xbf16>
    %cst_33 = arith.constant dense<0.000000e+00> : vector<8x8xf32>
    %55 = tpu.matmul %53, %54, %cst_33 {dimension_numbers = #tpu.dot_dimension_numbers<[1], [1], [0], [0], [0, 0, 1, 0], [], []>} : vector<8x4xbf16>, vector<8x4xbf16>, vector<8x8xf32> -> vector<8x8xf32>
    %cst_34 = arith.constant dense<0xFF800000> : vector<8xf32>
    %56 = vector.multi_reduction <maximumf>, %55, %cst_34 [1] : vector<8x8xf32> to vector<8xf32>
    %57 = vector.shape_cast %56 : vector<8xf32> to vector<8x1xf32>
    %58 = vector.broadcast %57 : vector<8x1xf32> to vector<8x8xf32>
    %59 = arith.subf %55, %58 : vector<8x8xf32>
    %60 = math.exp %59 : vector<8x8xf32>
    %cst_35 = arith.constant dense<0.000000e+00> : vector<8xf32>
    %61 = vector.multi_reduction <add>, %60, %cst_35 [1] : vector<8x8xf32> to vector<8xf32>
    %62 = vector.shape_cast %61 : vector<8xf32> to vector<8x1xf32>
    %63 = tpu.reciprocal %62 : vector<8x1xf32> -> vector<8x1xf32>
    %64 = vector.broadcast %63 : vector<8x1xf32> to vector<8x8xf32>
    %65 = arith.mulf %60, %64 : vector<8x8xf32>
    %66 = arith.truncf %65 : vector<8x8xf32> to vector<8x8xbf16>
    %67 = arith.truncf %52 : vector<8x4xf32> to vector<8x4xbf16>
    %cst_36 = arith.constant dense<0.000000e+00> : vector<8x4xf32>
    %68 = tpu.matmul %66, %67, %cst_36 {dimension_numbers = #tpu.dot_dimension_numbers<[1], [0], [0], [1], [0, 0, 1, 1], [], []>} : vector<8x8xbf16>, vector<8x4xbf16>, vector<8x4xf32> -> vector<8x4xf32>
    %c0_37 = arith.constant 0 : index
    %c0_38 = arith.constant 0 : index
    %69 = vector.load %arg8[%c0_37, %c0_38] : memref<8x32xf32, #tpu.memory_space<vmem>>, vector<8x32xf32>
    %70 = arith.truncf %68 : vector<8x4xf32> to vector<8x4xbf16>
    %71 = arith.index_cast %c1_i32 : i32 to index
    %c0_39 = arith.constant 0 : index
    %c0_40 = arith.constant 0 : index
    %72 = vector.load %arg5[%71, %c0_39, %c0_40] : memref<8x4x32xbf16, #tpu.memory_space<vmem>>, vector<1x4x32xbf16>
    %73 = vector.shape_cast %72 : vector<1x4x32xbf16> to vector<4x32xbf16>
    %cst_41 = arith.constant dense<0.000000e+00> : vector<8x32xf32>
    %74 = tpu.matmul %70, %73, %cst_41 {dimension_numbers = #tpu.dot_dimension_numbers<[1], [0], [0], [1], [0, 0, 1, 1], [], []>} : vector<8x4xbf16>, vector<4x32xbf16>, vector<8x32xf32> -> vector<8x32xf32>
    %75 = arith.addf %69, %74 : vector<8x32xf32>
    %c0_42 = arith.constant 0 : index
    %c0_43 = arith.constant 0 : index
    %76 = vector.load %arg8[%c0_42, %c0_43] : memref<8x32xf32, #tpu.memory_space<vmem>>, vector<8x32xf32>
    tpu.vector_store %arg8[%c0_42, %c0_43], %75 {strides = array<i32>} : memref<8x32xf32, #tpu.memory_space<vmem>>, vector<8x32xf32>,
    %c2_i32 = arith.constant 2 : i32
    %77 = arith.index_cast %c2_i32 : i32 to index
    %c0_44 = arith.constant 0 : index
    %c0_45 = arith.constant 0 : index
    %78 = vector.load %arg2[%77, %c0_44, %c0_45] : memref<8x32x4xbf16, #tpu.memory_space<vmem>>, vector<1x32x4xbf16>
    %79 = vector.shape_cast %78 : vector<1x32x4xbf16> to vector<32x4xbf16>
    %80 = arith.index_cast %c2_i32 : i32 to index
    %c0_46 = arith.constant 0 : index
    %c0_47 = arith.constant 0 : index
    %81 = vector.load %arg3[%80, %c0_46, %c0_47] : memref<8x32x4xbf16, #tpu.memory_space<vmem>>, vector<1x32x4xbf16>
    %82 = vector.shape_cast %81 : vector<1x32x4xbf16> to vector<32x4xbf16>
    %83 = arith.index_cast %c2_i32 : i32 to index
    %c0_48 = arith.constant 0 : index
    %c0_49 = arith.constant 0 : index
    %84 = vector.load %arg4[%83, %c0_48, %c0_49] : memref<8x32x4xbf16, #tpu.memory_space<vmem>>, vector<1x32x4xbf16>
    %85 = vector.shape_cast %84 : vector<1x32x4xbf16> to vector<32x4xbf16>
    %cst_50 = arith.constant dense<0.000000e+00> : vector<8x4xf32>
    %86 = tpu.matmul %2, %79, %cst_50 {dimension_numbers = #tpu.dot_dimension_numbers<[1], [0], [0], [1], [0, 0, 1, 1], [], []>} : vector<8x32xbf16>, vector<32x4xbf16>, vector<8x4xf32> -> vector<8x4xf32>
    %cst_51 = arith.constant dense<0.000000e+00> : vector<8x4xf32>
    %87 = tpu.matmul %2, %82, %cst_51 {dimension_numbers = #tpu.dot_dimension_numbers<[1], [0], [0], [1], [0, 0, 1, 1], [], []>} : vector<8x32xbf16>, vector<32x4xbf16>, vector<8x4xf32> -> vector<8x4xf32>
    %cst_52 = arith.constant dense<0.000000e+00> : vector<8x4xf32>
    %88 = tpu.matmul %2, %85, %cst_52 {dimension_numbers = #tpu.dot_dimension_numbers<[1], [0], [0], [1], [0, 0, 1, 1], [], []>} : vector<8x32xbf16>, vector<32x4xbf16>, vector<8x4xf32> -> vector<8x4xf32>
    %89 = arith.truncf %86 : vector<8x4xf32> to vector<8x4xbf16>
    %90 = arith.truncf %87 : vector<8x4xf32> to vector<8x4xbf16>
    %cst_53 = arith.constant dense<0.000000e+00> : vector<8x8xf32>
    %91 = tpu.matmul %89, %90, %cst_53 {dimension_numbers = #tpu.dot_dimension_numbers<[1], [1], [0], [0], [0, 0, 1, 0], [], []>} : vector<8x4xbf16>, vector<8x4xbf16>, vector<8x8xf32> -> vector<8x8xf32>
    %cst_54 = arith.constant dense<0xFF800000> : vector<8xf32>
    %92 = vector.multi_reduction <maximumf>, %91, %cst_54 [1] : vector<8x8xf32> to vector<8xf32>
    %93 = vector.shape_cast %92 : vector<8xf32> to vector<8x1xf32>
    %94 = vector.broadcast %93 : vector<8x1xf32> to vector<8x8xf32>
    %95 = arith.subf %91, %94 : vector<8x8xf32>
    %96 = math.exp %95 : vector<8x8xf32>
    %cst_55 = arith.constant dense<0.000000e+00> : vector<8xf32>
    %97 = vector.multi_reduction <add>, %96, %cst_55 [1] : vector<8x8xf32> to vector<8xf32>
    %98 = vector.shape_cast %97 : vector<8xf32> to vector<8x1xf32>
    %99 = tpu.reciprocal %98 : vector<8x1xf32> -> vector<8x1xf32>
    %100 = vector.broadcast %99 : vector<8x1xf32> to vector<8x8xf32>
    %101 = arith.mulf %96, %100 : vector<8x8xf32>
    %102 = arith.truncf %101 : vector<8x8xf32> to vector<8x8xbf16>
    %103 = arith.truncf %88 : vector<8x4xf32> to vector<8x4xbf16>
    %cst_56 = arith.constant dense<0.000000e+00> : vector<8x4xf32>
    %104 = tpu.matmul %102, %103, %cst_56 {dimension_numbers = #tpu.dot_dimension_numbers<[1], [0], [0], [1], [0, 0, 1, 1], [], []>} : vector<8x8xbf16>, vector<8x4xbf16>, vector<8x4xf32> -> vector<8x4xf32>
    %c0_57 = arith.constant 0 : index
    %c0_58 = arith.constant 0 : index
    %105 = vector.load %arg8[%c0_57, %c0_58] : memref<8x32xf32, #tpu.memory_space<vmem>>, vector<8x32xf32>
    %106 = arith.truncf %104 : vector<8x4xf32> to vector<8x4xbf16>
    %107 = arith.index_cast %c2_i32 : i32 to index
    %c0_59 = arith.constant 0 : index
    %c0_60 = arith.constant 0 : index
    %108 = vector.load %arg5[%107, %c0_59, %c0_60] : memref<8x4x32xbf16, #tpu.memory_space<vmem>>, vector<1x4x32xbf16>
    %109 = vector.shape_cast %108 : vector<1x4x32xbf16> to vector<4x32xbf16>
    %cst_61 = arith.constant dense<0.000000e+00> : vector<8x32xf32>
    %110 = tpu.matmul %106, %109, %cst_61 {dimension_numbers = #tpu.dot_dimension_numbers<[1], [0], [0], [1], [0, 0, 1, 1], [], []>} : vector<8x4xbf16>, vector<4x32xbf16>, vector<8x32xf32> -> vector<8x32xf32>
    %111 = arith.addf %105, %110 : vector<8x32xf32>
    %c0_62 = arith.constant 0 : index
    %c0_63 = arith.constant 0 : index
    %112 = vector.load %arg8[%c0_62, %c0_63] : memref<8x32xf32, #tpu.memory_space<vmem>>, vector<8x32xf32>
    tpu.vector_store %arg8[%c0_62, %c0_63], %111 {strides = array<i32>} : memref<8x32xf32, #tpu.memory_space<vmem>>, vector<8x32xf32>,
    %c3_i32 = arith.constant 3 : i32
    %113 = arith.index_cast %c3_i32 : i32 to index
    %c0_64 = arith.constant 0 : index
    %c0_65 = arith.constant 0 : index
    %114 = vector.load %arg2[%113, %c0_64, %c0_65] : memref<8x32x4xbf16, #tpu.memory_space<vmem>>, vector<1x32x4xbf16>
    %115 = vector.shape_cast %114 : vector<1x32x4xbf16> to vector<32x4xbf16>
    %116 = arith.index_cast %c3_i32 : i32 to index
    %c0_66 = arith.constant 0 : index
    %c0_67 = arith.constant 0 : index
    %117 = vector.load %arg3[%116, %c0_66, %c0_67] : memref<8x32x4xbf16, #tpu.memory_space<vmem>>, vector<1x32x4xbf16>
    %118 = vector.shape_cast %117 : vector<1x32x4xbf16> to vector<32x4xbf16>
    %119 = arith.index_cast %c3_i32 : i32 to index
    %c0_68 = arith.constant 0 : index
    %c0_69 = arith.constant 0 : index
    %120 = vector.load %arg4[%119, %c0_68, %c0_69] : memref<8x32x4xbf16, #tpu.memory_space<vmem>>, vector<1x32x4xbf16>
    %121 = vector.shape_cast %120 : vector<1x32x4xbf16> to vector<32x4xbf16>
    %cst_70 = arith.constant dense<0.000000e+00> : vector<8x4xf32>
    %122 = tpu.matmul %2, %115, %cst_70 {dimension_numbers = #tpu.dot_dimension_numbers<[1], [0], [0], [1], [0, 0, 1, 1], [], []>} : vector<8x32xbf16>, vector<32x4xbf16>, vector<8x4xf32> -> vector<8x4xf32>
    %cst_71 = arith.constant dense<0.000000e+00> : vector<8x4xf32>
    %123 = tpu.matmul %2, %118, %cst_71 {dimension_numbers = #tpu.dot_dimension_numbers<[1], [0], [0], [1], [0, 0, 1, 1], [], []>} : vector<8x32xbf16>, vector<32x4xbf16>, vector<8x4xf32> -> vector<8x4xf32>
    %cst_72 = arith.constant dense<0.000000e+00> : vector<8x4xf32>
    %124 = tpu.matmul %2, %121, %cst_72 {dimension_numbers = #tpu.dot_dimension_numbers<[1], [0], [0], [1], [0, 0, 1, 1], [], []>} : vector<8x32xbf16>, vector<32x4xbf16>, vector<8x4xf32> -> vector<8x4xf32>
    %125 = arith.truncf %122 : vector<8x4xf32> to vector<8x4xbf16>
    %126 = arith.truncf %123 : vector<8x4xf32> to vector<8x4xbf16>
    %cst_73 = arith.constant dense<0.000000e+00> : vector<8x8xf32>
    %127 = tpu.matmul %125, %126, %cst_73 {dimension_numbers = #tpu.dot_dimension_numbers<[1], [1], [0], [0], [0, 0, 1, 0], [], []>} : vector<8x4xbf16>, vector<8x4xbf16>, vector<8x8xf32> -> vector<8x8xf32>
    %cst_74 = arith.constant dense<0xFF800000> : vector<8xf32>
    %128 = vector.multi_reduction <maximumf>, %127, %cst_74 [1] : vector<8x8xf32> to vector<8xf32>
    %129 = vector.shape_cast %128 : vector<8xf32> to vector<8x1xf32>
    %130 = vector.broadcast %129 : vector<8x1xf32> to vector<8x8xf32>
    %131 = arith.subf %127, %130 : vector<8x8xf32>
    %132 = math.exp %131 : vector<8x8xf32>
    %cst_75 = arith.constant dense<0.000000e+00> : vector<8xf32>
    %133 = vector.multi_reduction <add>, %132, %cst_75 [1] : vector<8x8xf32> to vector<8xf32>
    %134 = vector.shape_cast %133 : vector<8xf32> to vector<8x1xf32>
    %135 = tpu.reciprocal %134 : vector<8x1xf32> -> vector<8x1xf32>
    %136 = vector.broadcast %135 : vector<8x1xf32> to vector<8x8xf32>
    %137 = arith.mulf %132, %136 : vector<8x8xf32>
    %138 = arith.truncf %137 : vector<8x8xf32> to vector<8x8xbf16>
    %139 = arith.truncf %124 : vector<8x4xf32> to vector<8x4xbf16>
    %cst_76 = arith.constant dense<0.000000e+00> : vector<8x4xf32>
    %140 = tpu.matmul %138, %139, %cst_76 {dimension_numbers = #tpu.dot_dimension_numbers<[1], [0], [0], [1], [0, 0, 1, 1], [], []>} : vector<8x8xbf16>, vector<8x4xbf16>, vector<8x4xf32> -> vector<8x4xf32>
    %c0_77 = arith.constant 0 : index
    %c0_78 = arith.constant 0 : index
    %141 = vector.load %arg8[%c0_77, %c0_78] : memref<8x32xf32, #tpu.memory_space<vmem>>, vector<8x32xf32>
    %142 = arith.truncf %140 : vector<8x4xf32> to vector<8x4xbf16>
    %143 = arith.index_cast %c3_i32 : i32 to index
    %c0_79 = arith.constant 0 : index
    %c0_80 = arith.constant 0 : index
    %144 = vector.load %arg5[%143, %c0_79, %c0_80] : memref<8x4x32xbf16, #tpu.memory_space<vmem>>, vector<1x4x32xbf16>
    %145 = vector.shape_cast %144 : vector<1x4x32xbf16> to vector<4x32xbf16>
    %cst_81 = arith.constant dense<0.000000e+00> : vector<8x32xf32>
    %146 = tpu.matmul %142, %145, %cst_81 {dimension_numbers = #tpu.dot_dimension_numbers<[1], [0], [0], [1], [0, 0, 1, 1], [], []>} : vector<8x4xbf16>, vector<4x32xbf16>, vector<8x32xf32> -> vector<8x32xf32>
    %147 = arith.addf %141, %146 : vector<8x32xf32>
    %c0_82 = arith.constant 0 : index
    %c0_83 = arith.constant 0 : index
    %148 = vector.load %arg8[%c0_82, %c0_83] : memref<8x32xf32, #tpu.memory_space<vmem>>, vector<8x32xf32>
    tpu.vector_store %arg8[%c0_82, %c0_83], %147 {strides = array<i32>} : memref<8x32xf32, #tpu.memory_space<vmem>>, vector<8x32xf32>,
    %c4_i32 = arith.constant 4 : i32
    %149 = arith.index_cast %c4_i32 : i32 to index
    %c0_84 = arith.constant 0 : index
    %c0_85 = arith.constant 0 : index
    %150 = vector.load %arg2[%149, %c0_84, %c0_85] : memref<8x32x4xbf16, #tpu.memory_space<vmem>>, vector<1x32x4xbf16>
    %151 = vector.shape_cast %150 : vector<1x32x4xbf16> to vector<32x4xbf16>
    %152 = arith.index_cast %c4_i32 : i32 to index
    %c0_86 = arith.constant 0 : index
    %c0_87 = arith.constant 0 : index
    %153 = vector.load %arg3[%152, %c0_86, %c0_87] : memref<8x32x4xbf16, #tpu.memory_space<vmem>>, vector<1x32x4xbf16>
    %154 = vector.shape_cast %153 : vector<1x32x4xbf16> to vector<32x4xbf16>
    %155 = arith.index_cast %c4_i32 : i32 to index
    %c0_88 = arith.constant 0 : index
    %c0_89 = arith.constant 0 : index
    %156 = vector.load %arg4[%155, %c0_88, %c0_89] : memref<8x32x4xbf16, #tpu.memory_space<vmem>>, vector<1x32x4xbf16>
    %157 = vector.shape_cast %156 : vector<1x32x4xbf16> to vector<32x4xbf16>
    %cst_90 = arith.constant dense<0.000000e+00> : vector<8x4xf32>
    %158 = tpu.matmul %2, %151, %cst_90 {dimension_numbers = #tpu.dot_dimension_numbers<[1], [0], [0], [1], [0, 0, 1, 1], [], []>} : vector<8x32xbf16>, vector<32x4xbf16>, vector<8x4xf32> -> vector<8x4xf32>
    %cst_91 = arith.constant dense<0.000000e+00> : vector<8x4xf32>
    %159 = tpu.matmul %2, %154, %cst_91 {dimension_numbers = #tpu.dot_dimension_numbers<[1], [0], [0], [1], [0, 0, 1, 1], [], []>} : vector<8x32xbf16>, vector<32x4xbf16>, vector<8x4xf32> -> vector<8x4xf32>
    %cst_92 = arith.constant dense<0.000000e+00> : vector<8x4xf32>
    %160 = tpu.matmul %2, %157, %cst_92 {dimension_numbers = #tpu.dot_dimension_numbers<[1], [0], [0], [1], [0, 0, 1, 1], [], []>} : vector<8x32xbf16>, vector<32x4xbf16>, vector<8x4xf32> -> vector<8x4xf32>
    %161 = arith.truncf %158 : vector<8x4xf32> to vector<8x4xbf16>
    %162 = arith.truncf %159 : vector<8x4xf32> to vector<8x4xbf16>
    %cst_93 = arith.constant dense<0.000000e+00> : vector<8x8xf32>
    %163 = tpu.matmul %161, %162, %cst_93 {dimension_numbers = #tpu.dot_dimension_numbers<[1], [1], [0], [0], [0, 0, 1, 0], [], []>} : vector<8x4xbf16>, vector<8x4xbf16>, vector<8x8xf32> -> vector<8x8xf32>
    %cst_94 = arith.constant dense<0xFF800000> : vector<8xf32>
    %164 = vector.multi_reduction <maximumf>, %163, %cst_94 [1] : vector<8x8xf32> to vector<8xf32>
    %165 = vector.shape_cast %164 : vector<8xf32> to vector<8x1xf32>
    %166 = vector.broadcast %165 : vector<8x1xf32> to vector<8x8xf32>
    %167 = arith.subf %163, %166 : vector<8x8xf32>
    %168 = math.exp %167 : vector<8x8xf32>
    %cst_95 = arith.constant dense<0.000000e+00> : vector<8xf32>
    %169 = vector.multi_reduction <add>, %168, %cst_95 [1] : vector<8x8xf32> to vector<8xf32>
    %170 = vector.shape_cast %169 : vector<8xf32> to vector<8x1xf32>
    %171 = tpu.reciprocal %170 : vector<8x1xf32> -> vector<8x1xf32>
    %172 = vector.broadcast %171 : vector<8x1xf32> to vector<8x8xf32>
    %173 = arith.mulf %168, %172 : vector<8x8xf32>
    %174 = arith.truncf %173 : vector<8x8xf32> to vector<8x8xbf16>
    %175 = arith.truncf %160 : vector<8x4xf32> to vector<8x4xbf16>
    %cst_96 = arith.constant dense<0.000000e+00> : vector<8x4xf32>
    %176 = tpu.matmul %174, %175, %cst_96 {dimension_numbers = #tpu.dot_dimension_numbers<[1], [0], [0], [1], [0, 0, 1, 1], [], []>} : vector<8x8xbf16>, vector<8x4xbf16>, vector<8x4xf32> -> vector<8x4xf32>
    %c0_97 = arith.constant 0 : index
    %c0_98 = arith.constant 0 : index
    %177 = vector.load %arg8[%c0_97, %c0_98] : memref<8x32xf32, #tpu.memory_space<vmem>>, vector<8x32xf32>
    %178 = arith.truncf %176 : vector<8x4xf32> to vector<8x4xbf16>
    %179 = arith.index_cast %c4_i32 : i32 to index
    %c0_99 = arith.constant 0 : index
    %c0_100 = arith.constant 0 : index
    %180 = vector.load %arg5[%179, %c0_99, %c0_100] : memref<8x4x32xbf16, #tpu.memory_space<vmem>>, vector<1x4x32xbf16>
    %181 = vector.shape_cast %180 : vector<1x4x32xbf16> to vector<4x32xbf16>
    %cst_101 = arith.constant dense<0.000000e+00> : vector<8x32xf32>
    %182 = tpu.matmul %178, %181, %cst_101 {dimension_numbers = #tpu.dot_dimension_numbers<[1], [0], [0], [1], [0, 0, 1, 1], [], []>} : vector<8x4xbf16>, vector<4x32xbf16>, vector<8x32xf32> -> vector<8x32xf32>
    %183 = arith.addf %177, %182 : vector<8x32xf32>
    %c0_102 = arith.constant 0 : index
    %c0_103 = arith.constant 0 : index
    %184 = vector.load %arg8[%c0_102, %c0_103] : memref<8x32xf32, #tpu.memory_space<vmem>>, vector<8x32xf32>
    tpu.vector_store %arg8[%c0_102, %c0_103], %183 {strides = array<i32>} : memref<8x32xf32, #tpu.memory_space<vmem>>, vector<8x32xf32>,
    %c5_i32 = arith.constant 5 : i32
    %185 = arith.index_cast %c5_i32 : i32 to index
    %c0_104 = arith.constant 0 : index
    %c0_105 = arith.constant 0 : index
    %186 = vector.load %arg2[%185, %c0_104, %c0_105] : memref<8x32x4xbf16, #tpu.memory_space<vmem>>, vector<1x32x4xbf16>
    %187 = vector.shape_cast %186 : vector<1x32x4xbf16> to vector<32x4xbf16>
    %188 = arith.index_cast %c5_i32 : i32 to index
    %c0_106 = arith.constant 0 : index
    %c0_107 = arith.constant 0 : index
    %189 = vector.load %arg3[%188, %c0_106, %c0_107] : memref<8x32x4xbf16, #tpu.memory_space<vmem>>, vector<1x32x4xbf16>
    %190 = vector.shape_cast %189 : vector<1x32x4xbf16> to vector<32x4xbf16>
    %191 = arith.index_cast %c5_i32 : i32 to index
    %c0_108 = arith.constant 0 : index
    %c0_109 = arith.constant 0 : index
    %192 = vector.load %arg4[%191, %c0_108, %c0_109] : memref<8x32x4xbf16, #tpu.memory_space<vmem>>, vector<1x32x4xbf16>
    %193 = vector.shape_cast %192 : vector<1x32x4xbf16> to vector<32x4xbf16>
    %cst_110 = arith.constant dense<0.000000e+00> : vector<8x4xf32>
    %194 = tpu.matmul %2, %187, %cst_110 {dimension_numbers = #tpu.dot_dimension_numbers<[1], [0], [0], [1], [0, 0, 1, 1], [], []>} : vector<8x32xbf16>, vector<32x4xbf16>, vector<8x4xf32> -> vector<8x4xf32>
    %cst_111 = arith.constant dense<0.000000e+00> : vector<8x4xf32>
    %195 = tpu.matmul %2, %190, %cst_111 {dimension_numbers = #tpu.dot_dimension_numbers<[1], [0], [0], [1], [0, 0, 1, 1], [], []>} : vector<8x32xbf16>, vector<32x4xbf16>, vector<8x4xf32> -> vector<8x4xf32>
    %cst_112 = arith.constant dense<0.000000e+00> : vector<8x4xf32>
    %196 = tpu.matmul %2, %193, %cst_112 {dimension_numbers = #tpu.dot_dimension_numbers<[1], [0], [0], [1], [0, 0, 1, 1], [], []>} : vector<8x32xbf16>, vector<32x4xbf16>, vector<8x4xf32> -> vector<8x4xf32>
    %197 = arith.truncf %194 : vector<8x4xf32> to vector<8x4xbf16>
    %198 = arith.truncf %195 : vector<8x4xf32> to vector<8x4xbf16>
    %cst_113 = arith.constant dense<0.000000e+00> : vector<8x8xf32>
    %199 = tpu.matmul %197, %198, %cst_113 {dimension_numbers = #tpu.dot_dimension_numbers<[1], [1], [0], [0], [0, 0, 1, 0], [], []>} : vector<8x4xbf16>, vector<8x4xbf16>, vector<8x8xf32> -> vector<8x8xf32>
    %cst_114 = arith.constant dense<0xFF800000> : vector<8xf32>
    %200 = vector.multi_reduction <maximumf>, %199, %cst_114 [1] : vector<8x8xf32> to vector<8xf32>
    %201 = vector.shape_cast %200 : vector<8xf32> to vector<8x1xf32>
    %202 = vector.broadcast %201 : vector<8x1xf32> to vector<8x8xf32>
    %203 = arith.subf %199, %202 : vector<8x8xf32>
    %204 = math.exp %203 : vector<8x8xf32>
    %cst_115 = arith.constant dense<0.000000e+00> : vector<8xf32>
    %205 = vector.multi_reduction <add>, %204, %cst_115 [1] : vector<8x8xf32> to vector<8xf32>
    %206 = vector.shape_cast %205 : vector<8xf32> to vector<8x1xf32>
    %207 = tpu.reciprocal %206 : vector<8x1xf32> -> vector<8x1xf32>
    %208 = vector.broadcast %207 : vector<8x1xf32> to vector<8x8xf32>
    %209 = arith.mulf %204, %208 : vector<8x8xf32>
    %210 = arith.truncf %209 : vector<8x8xf32> to vector<8x8xbf16>
    %211 = arith.truncf %196 : vector<8x4xf32> to vector<8x4xbf16>
    %cst_116 = arith.constant dense<0.000000e+00> : vector<8x4xf32>
    %212 = tpu.matmul %210, %211, %cst_116 {dimension_numbers = #tpu.dot_dimension_numbers<[1], [0], [0], [1], [0, 0, 1, 1], [], []>} : vector<8x8xbf16>, vector<8x4xbf16>, vector<8x4xf32> -> vector<8x4xf32>
    %c0_117 = arith.constant 0 : index
    %c0_118 = arith.constant 0 : index
    %213 = vector.load %arg8[%c0_117, %c0_118] : memref<8x32xf32, #tpu.memory_space<vmem>>, vector<8x32xf32>
    %214 = arith.truncf %212 : vector<8x4xf32> to vector<8x4xbf16>
    %215 = arith.index_cast %c5_i32 : i32 to index
    %c0_119 = arith.constant 0 : index
    %c0_120 = arith.constant 0 : index
    %216 = vector.load %arg5[%215, %c0_119, %c0_120] : memref<8x4x32xbf16, #tpu.memory_space<vmem>>, vector<1x4x32xbf16>
    %217 = vector.shape_cast %216 : vector<1x4x32xbf16> to vector<4x32xbf16>
    %cst_121 = arith.constant dense<0.000000e+00> : vector<8x32xf32>
    %218 = tpu.matmul %214, %217, %cst_121 {dimension_numbers = #tpu.dot_dimension_numbers<[1], [0], [0], [1], [0, 0, 1, 1], [], []>} : vector<8x4xbf16>, vector<4x32xbf16>, vector<8x32xf32> -> vector<8x32xf32>
    %219 = arith.addf %213, %218 : vector<8x32xf32>
    %c0_122 = arith.constant 0 : index
    %c0_123 = arith.constant 0 : index
    %220 = vector.load %arg8[%c0_122, %c0_123] : memref<8x32xf32, #tpu.memory_space<vmem>>, vector<8x32xf32>
    tpu.vector_store %arg8[%c0_122, %c0_123], %219 {strides = array<i32>} : memref<8x32xf32, #tpu.memory_space<vmem>>, vector<8x32xf32>,
    %c6_i32 = arith.constant 6 : i32
    %221 = arith.index_cast %c6_i32 : i32 to index
    %c0_124 = arith.constant 0 : index
    %c0_125 = arith.constant 0 : index
    %222 = vector.load %arg2[%221, %c0_124, %c0_125] : memref<8x32x4xbf16, #tpu.memory_space<vmem>>, vector<1x32x4xbf16>
    %223 = vector.shape_cast %222 : vector<1x32x4xbf16> to vector<32x4xbf16>
    %224 = arith.index_cast %c6_i32 : i32 to index
    %c0_126 = arith.constant 0 : index
    %c0_127 = arith.constant 0 : index
    %225 = vector.load %arg3[%224, %c0_126, %c0_127] : memref<8x32x4xbf16, #tpu.memory_space<vmem>>, vector<1x32x4xbf16>
    %226 = vector.shape_cast %225 : vector<1x32x4xbf16> to vector<32x4xbf16>
    %227 = arith.index_cast %c6_i32 : i32 to index
    %c0_128 = arith.constant 0 : index
    %c0_129 = arith.constant 0 : index
    %228 = vector.load %arg4[%227, %c0_128, %c0_129] : memref<8x32x4xbf16, #tpu.memory_space<vmem>>, vector<1x32x4xbf16>
    %229 = vector.shape_cast %228 : vector<1x32x4xbf16> to vector<32x4xbf16>
    %cst_130 = arith.constant dense<0.000000e+00> : vector<8x4xf32>
    %230 = tpu.matmul %2, %223, %cst_130 {dimension_numbers = #tpu.dot_dimension_numbers<[1], [0], [0], [1], [0, 0, 1, 1], [], []>} : vector<8x32xbf16>, vector<32x4xbf16>, vector<8x4xf32> -> vector<8x4xf32>
    %cst_131 = arith.constant dense<0.000000e+00> : vector<8x4xf32>
    %231 = tpu.matmul %2, %226, %cst_131 {dimension_numbers = #tpu.dot_dimension_numbers<[1], [0], [0], [1], [0, 0, 1, 1], [], []>} : vector<8x32xbf16>, vector<32x4xbf16>, vector<8x4xf32> -> vector<8x4xf32>
    %cst_132 = arith.constant dense<0.000000e+00> : vector<8x4xf32>
    %232 = tpu.matmul %2, %229, %cst_132 {dimension_numbers = #tpu.dot_dimension_numbers<[1], [0], [0], [1], [0, 0, 1, 1], [], []>} : vector<8x32xbf16>, vector<32x4xbf16>, vector<8x4xf32> -> vector<8x4xf32>
    %233 = arith.truncf %230 : vector<8x4xf32> to vector<8x4xbf16>
    %234 = arith.truncf %231 : vector<8x4xf32> to vector<8x4xbf16>
    %cst_133 = arith.constant dense<0.000000e+00> : vector<8x8xf32>
    %235 = tpu.matmul %233, %234, %cst_133 {dimension_numbers = #tpu.dot_dimension_numbers<[1], [1], [0], [0], [0, 0, 1, 0], [], []>} : vector<8x4xbf16>, vector<8x4xbf16>, vector<8x8xf32> -> vector<8x8xf32>
    %cst_134 = arith.constant dense<0xFF800000> : vector<8xf32>
    %236 = vector.multi_reduction <maximumf>, %235, %cst_134 [1] : vector<8x8xf32> to vector<8xf32>
    %237 = vector.shape_cast %236 : vector<8xf32> to vector<8x1xf32>
    %238 = vector.broadcast %237 : vector<8x1xf32> to vector<8x8xf32>
    %239 = arith.subf %235, %238 : vector<8x8xf32>
    %240 = math.exp %239 : vector<8x8xf32>
    %cst_135 = arith.constant dense<0.000000e+00> : vector<8xf32>
    %241 = vector.multi_reduction <add>, %240, %cst_135 [1] : vector<8x8xf32> to vector<8xf32>
    %242 = vector.shape_cast %241 : vector<8xf32> to vector<8x1xf32>
    %243 = tpu.reciprocal %242 : vector<8x1xf32> -> vector<8x1xf32>
    %244 = vector.broadcast %243 : vector<8x1xf32> to vector<8x8xf32>
    %245 = arith.mulf %240, %244 : vector<8x8xf32>
    %246 = arith.truncf %245 : vector<8x8xf32> to vector<8x8xbf16>
    %247 = arith.truncf %232 : vector<8x4xf32> to vector<8x4xbf16>
    %cst_136 = arith.constant dense<0.000000e+00> : vector<8x4xf32>
    %248 = tpu.matmul %246, %247, %cst_136 {dimension_numbers = #tpu.dot_dimension_numbers<[1], [0], [0], [1], [0, 0, 1, 1], [], []>} : vector<8x8xbf16>, vector<8x4xbf16>, vector<8x4xf32> -> vector<8x4xf32>
    %c0_137 = arith.constant 0 : index
    %c0_138 = arith.constant 0 : index
    %249 = vector.load %arg8[%c0_137, %c0_138] : memref<8x32xf32, #tpu.memory_space<vmem>>, vector<8x32xf32>
    %250 = arith.truncf %248 : vector<8x4xf32> to vector<8x4xbf16>
    %251 = arith.index_cast %c6_i32 : i32 to index
    %c0_139 = arith.constant 0 : index
    %c0_140 = arith.constant 0 : index
    %252 = vector.load %arg5[%251, %c0_139, %c0_140] : memref<8x4x32xbf16, #tpu.memory_space<vmem>>, vector<1x4x32xbf16>
    %253 = vector.shape_cast %252 : vector<1x4x32xbf16> to vector<4x32xbf16>
    %cst_141 = arith.constant dense<0.000000e+00> : vector<8x32xf32>
    %254 = tpu.matmul %250, %253, %cst_141 {dimension_numbers = #tpu.dot_dimension_numbers<[1], [0], [0], [1], [0, 0, 1, 1], [], []>} : vector<8x4xbf16>, vector<4x32xbf16>, vector<8x32xf32> -> vector<8x32xf32>
    %255 = arith.addf %249, %254 : vector<8x32xf32>
    %c0_142 = arith.constant 0 : index
    %c0_143 = arith.constant 0 : index
    %256 = vector.load %arg8[%c0_142, %c0_143] : memref<8x32xf32, #tpu.memory_space<vmem>>, vector<8x32xf32>
    tpu.vector_store %arg8[%c0_142, %c0_143], %255 {strides = array<i32>} : memref<8x32xf32, #tpu.memory_space<vmem>>, vector<8x32xf32>,
    %c7_i32 = arith.constant 7 : i32
    %257 = arith.index_cast %c7_i32 : i32 to index
    %c0_144 = arith.constant 0 : index
    %c0_145 = arith.constant 0 : index
    %258 = vector.load %arg2[%257, %c0_144, %c0_145] : memref<8x32x4xbf16, #tpu.memory_space<vmem>>, vector<1x32x4xbf16>
    %259 = vector.shape_cast %258 : vector<1x32x4xbf16> to vector<32x4xbf16>
    %260 = arith.index_cast %c7_i32 : i32 to index
    %c0_146 = arith.constant 0 : index
    %c0_147 = arith.constant 0 : index
    %261 = vector.load %arg3[%260, %c0_146, %c0_147] : memref<8x32x4xbf16, #tpu.memory_space<vmem>>, vector<1x32x4xbf16>
    %262 = vector.shape_cast %261 : vector<1x32x4xbf16> to vector<32x4xbf16>
    %263 = arith.index_cast %c7_i32 : i32 to index
    %c0_148 = arith.constant 0 : index
    %c0_149 = arith.constant 0 : index
    %264 = vector.load %arg4[%263, %c0_148, %c0_149] : memref<8x32x4xbf16, #tpu.memory_space<vmem>>, vector<1x32x4xbf16>
    %265 = vector.shape_cast %264 : vector<1x32x4xbf16> to vector<32x4xbf16>
    %cst_150 = arith.constant dense<0.000000e+00> : vector<8x4xf32>
    %266 = tpu.matmul %2, %259, %cst_150 {dimension_numbers = #tpu.dot_dimension_numbers<[1], [0], [0], [1], [0, 0, 1, 1], [], []>} : vector<8x32xbf16>, vector<32x4xbf16>, vector<8x4xf32> -> vector<8x4xf32>
    %cst_151 = arith.constant dense<0.000000e+00> : vector<8x4xf32>
    %267 = tpu.matmul %2, %262, %cst_151 {dimension_numbers = #tpu.dot_dimension_numbers<[1], [0], [0], [1], [0, 0, 1, 1], [], []>} : vector<8x32xbf16>, vector<32x4xbf16>, vector<8x4xf32> -> vector<8x4xf32>
    %cst_152 = arith.constant dense<0.000000e+00> : vector<8x4xf32>
    %268 = tpu.matmul %2, %265, %cst_152 {dimension_numbers = #tpu.dot_dimension_numbers<[1], [0], [0], [1], [0, 0, 1, 1], [], []>} : vector<8x32xbf16>, vector<32x4xbf16>, vector<8x4xf32> -> vector<8x4xf32>
    %269 = arith.truncf %266 : vector<8x4xf32> to vector<8x4xbf16>
    %270 = arith.truncf %267 : vector<8x4xf32> to vector<8x4xbf16>
    %cst_153 = arith.constant dense<0.000000e+00> : vector<8x8xf32>
    %271 = tpu.matmul %269, %270, %cst_153 {dimension_numbers = #tpu.dot_dimension_numbers<[1], [1], [0], [0], [0, 0, 1, 0], [], []>} : vector<8x4xbf16>, vector<8x4xbf16>, vector<8x8xf32> -> vector<8x8xf32>
    %cst_154 = arith.constant dense<0xFF800000> : vector<8xf32>
    %272 = vector.multi_reduction <maximumf>, %271, %cst_154 [1] : vector<8x8xf32> to vector<8xf32>
    %273 = vector.shape_cast %272 : vector<8xf32> to vector<8x1xf32>
    %274 = vector.broadcast %273 : vector<8x1xf32> to vector<8x8xf32>
    %275 = arith.subf %271, %274 : vector<8x8xf32>
    %276 = math.exp %275 : vector<8x8xf32>
    %cst_155 = arith.constant dense<0.000000e+00> : vector<8xf32>
    %277 = vector.multi_reduction <add>, %276, %cst_155 [1] : vector<8x8xf32> to vector<8xf32>
    %278 = vector.shape_cast %277 : vector<8xf32> to vector<8x1xf32>
    %279 = tpu.reciprocal %278 : vector<8x1xf32> -> vector<8x1xf32>
    %280 = vector.broadcast %279 : vector<8x1xf32> to vector<8x8xf32>
    %281 = arith.mulf %276, %280 : vector<8x8xf32>
    %282 = arith.truncf %281 : vector<8x8xf32> to vector<8x8xbf16>
    %283 = arith.truncf %268 : vector<8x4xf32> to vector<8x4xbf16>
    %cst_156 = arith.constant dense<0.000000e+00> : vector<8x4xf32>
    %284 = tpu.matmul %282, %283, %cst_156 {dimension_numbers = #tpu.dot_dimension_numbers<[1], [0], [0], [1], [0, 0, 1, 1], [], []>} : vector<8x8xbf16>, vector<8x4xbf16>, vector<8x4xf32> -> vector<8x4xf32>
    %c0_157 = arith.constant 0 : index
    %c0_158 = arith.constant 0 : index
    %285 = vector.load %arg8[%c0_157, %c0_158] : memref<8x32xf32, #tpu.memory_space<vmem>>, vector<8x32xf32>
    %286 = arith.truncf %284 : vector<8x4xf32> to vector<8x4xbf16>
    %287 = arith.index_cast %c7_i32 : i32 to index
    %c0_159 = arith.constant 0 : index
    %c0_160 = arith.constant 0 : index
    %288 = vector.load %arg5[%287, %c0_159, %c0_160] : memref<8x4x32xbf16, #tpu.memory_space<vmem>>, vector<1x4x32xbf16>
    %289 = vector.shape_cast %288 : vector<1x4x32xbf16> to vector<4x32xbf16>
    %cst_161 = arith.constant dense<0.000000e+00> : vector<8x32xf32>
    %290 = tpu.matmul %286, %289, %cst_161 {dimension_numbers = #tpu.dot_dimension_numbers<[1], [0], [0], [1], [0, 0, 1, 1], [], []>} : vector<8x4xbf16>, vector<4x32xbf16>, vector<8x32xf32> -> vector<8x32xf32>
    %291 = arith.addf %285, %290 : vector<8x32xf32>
    %c0_162 = arith.constant 0 : index
    %c0_163 = arith.constant 0 : index
    %292 = vector.load %arg8[%c0_162, %c0_163] : memref<8x32xf32, #tpu.memory_space<vmem>>, vector<8x32xf32>
    tpu.vector_store %arg8[%c0_162, %c0_163], %291 {strides = array<i32>} : memref<8x32xf32, #tpu.memory_space<vmem>>, vector<8x32xf32>,
    %c8_i32 = arith.constant 8 : i32
    %c0_164 = arith.constant 0 : index
    %c0_165 = arith.constant 0 : index
    %293 = vector.load %arg8[%c0_164, %c0_165] : memref<8x32xf32, #tpu.memory_space<vmem>>, vector<8x32xf32>
    %c0_166 = arith.constant 0 : index
    %c0_167 = arith.constant 0 : index
    %294 = vector.load %arg6[%c0_166, %c0_167] : memref<1x32xf32, #tpu.memory_space<vmem>>, vector<1x32xf32>
    %295 = vector.broadcast %294 : vector<1x32xf32> to vector<8x32xf32>
    %296 = arith.addf %293, %295 : vector<8x32xf32>
    %c0_168 = arith.constant 0 : index
    %c0_169 = arith.constant 0 : index
    %c0_170 = arith.constant 0 : index
    %297 = vector.load %arg7[%c0_168, %c0_169, %c0_170] : memref<1x8x32xf32, #tpu.memory_space<vmem>>, vector<1x8x32xf32>
    %298 = vector.shape_cast %297 : vector<1x8x32xf32> to vector<8x32xf32>
    %299 = vector.shape_cast %296 : vector<8x32xf32> to vector<1x8x32xf32>
    tpu.vector_store %arg7[%c0_168, %c0_169, %c0_170], %299 {strides = array<i32>} : memref<1x8x32xf32, #tpu.memory_space<vmem>>, vector<1x8x32xf32>,
    return
  }
  func.func @transform_0(%arg0: i32) -> (i32, i32, i32) {
    %c0_i32 = arith.constant 0 : i32
    %c0_i32_0 = arith.constant 0 : i32
    %c0_i32_1 = arith.constant 0 : i32
    return %arg0, %c0_i32, %c0_i32_0 : i32, i32, i32
  }
  func.func @transform_1(%arg0: i32) -> (i32, i32, i32) {
    %c0_i32 = arith.constant 0 : i32
    %c0_i32_0 = arith.constant 0 : i32
    %c0_i32_1 = arith.constant 0 : i32
    %c0_i32_2 = arith.constant 0 : i32
    return %c0_i32, %c0_i32_0, %c0_i32_1 : i32, i32, i32
  }
  func.func @transform_2(%arg0: i32) -> (i32, i32, i32) {
    %c0_i32 = arith.constant 0 : i32
    %c0_i32_0 = arith.constant 0 : i32
    %c0_i32_1 = arith.constant 0 : i32
    %c0_i32_2 = arith.constant 0 : i32
    return %c0_i32, %c0_i32_0, %c0_i32_1 : i32, i32, i32
  }
  func.func @transform_3(%arg0: i32) -> (i32, i32, i32) {
    %c0_i32 = arith.constant 0 : i32
    %c0_i32_0 = arith.constant 0 : i32
    %c0_i32_1 = arith.constant 0 : i32
    %c0_i32_2 = arith.constant 0 : i32
    return %c0_i32, %c0_i32_0, %c0_i32_1 : i32, i32, i32
  }
  func.func @transform_4(%arg0: i32) -> (i32, i32, i32) {
    %c0_i32 = arith.constant 0 : i32
    %c0_i32_0 = arith.constant 0 : i32
    %c0_i32_1 = arith.constant 0 : i32
    %c0_i32_2 = arith.constant 0 : i32
    return %c0_i32, %c0_i32_0, %c0_i32_1 : i32, i32, i32
  }
  func.func @transform_5(%arg0: i32) -> (i32, i32) {
    %c0_i32 = arith.constant 0 : i32
    %c0_i32_0 = arith.constant 0 : i32
    %c0_i32_1 = arith.constant 0 : i32
    return %c0_i32, %c0_i32_0 : i32, i32
  }
  func.func @transform_6(%arg0: i32) -> (i32, i32, i32) {
    %c0_i32 = arith.constant 0 : i32
    %c0_i32_0 = arith.constant 0 : i32
    %c0_i32_1 = arith.constant 0 : i32
    return %arg0, %c0_i32, %c0_i32_0 : i32, i32, i32
  }
}

</mosaic_0001>

<llo_original>
// kernel: tpu_custom_call.1
$region0: #{tpu_custom_call.1}
  #allocation0 [shape = 'u32[]', space=smem, size = 0x4, offset = 0x4, fixed_abs, tag = 'smem constant byte address 0x4 - core index']
  #allocation1 [shape = 'u32[72,128]{1,0:T(1,128)}', space=vmem, size = 0x9000, scoped, tag = 'internal scratch']
  #allocation2 [shape = 'f32[8,32]{1,0:T(8,128)}', space=vmem, size = 0x1000, scoped, tag = 'scratch operand']
  %s0 = inlined_call_operand.vmem [shape: f32[2,8,32], index: 0, kind: input, shape index: {}]
  %s1 = inlined_call_operand.vmem [shape: bf16[8,32,4], index: 1, kind: input, shape index: {}]
  %s2 = inlined_call_operand.vmem [shape: bf16[8,32,4], index: 2, kind: input, shape index: {}]
  %s3 = inlined_call_operand.vmem [shape: bf16[8,32,4], index: 3, kind: input, shape index: {}]
  %s4 = inlined_call_operand.vmem [shape: bf16[8,4,32], index: 4, kind: input, shape index: {}]
  %s5 = inlined_call_operand.vmem [shape: f32[1,32], index: 5, kind: input, shape index: {}]
  %s6 = inlined_call_operand.hbm [shape: f32[2,8,32], index: 6, kind: output, shape index: {}]
  %s7 = sld [smem:[#allocation0]]
  $region57: #{tpu_custom_call.1} parent=0
    _
  %s9 = ssub.s32 1, %s7
  %s10 = scalar_select 0, %s9, %s7
  $region1: #{tpu_custom_call.1} parent=0
    #allocation3 [shape = 'u8[8192]{0}', space=vmem, size = 0x2000, scoped, tag = 'output window, operand 0']
    #allocation4 [shape = 's32[2]{0}', space=sflag, size = 0x8, scoped, tag = 'scoped memory for tpu_custom_call.1']
    %11 = vsyncpa [#allocation4], 0
    %s12 = scalar_lea.sflag [#allocation4], 1
    %13 = vsyncpa %s12, 0
    loop: start=0, step=1, limit=4
    $region2: #{tpu_custom_call.1} parent=1 // loop_pre_header
      _
    $region3: #{tpu_custom_call.1} parent=1 // loop_header
      %s15 = sphi 0, %s19
      %p16 = scmp.ge.s32.totalorder %s15, 4
      %s25 = sphi 0, %s27
      %s28 = sphi 0, %s25
      %s29 = sphi 0, %s28
      %s45 = sphi 0, %s29
      %s49 = sphi 0, %s49
      %s51 = sphi 0, %s49
      %s52 = sphi 0, %s51
      %s66 = sphi 0, %s52
      %s70 = sphi 0, %s70
      %s72 = sphi 0, %s70
      %s73 = sphi 0, %s72
      %s87 = sphi 0, %s73
      %s91 = sphi 0, %s91
      %s93 = sphi 0, %s91
      %s94 = sphi 0, %s93
      %s108 = sphi 0, %s94
      %s112 = sphi 0, %s112
      %s114 = sphi 0, %s112
      %s115 = sphi 0, %s114
      %s129 = sphi 0, %s115
      %s133 = sphi 0, %s133
      %s135 = sphi 0, %s133
      %s136 = sphi 0, %s135
      %s150 = sphi 0, %s136
      %s156 = sphi 0, %s158
      %s159 = sphi 0, %s156
      %s160 = sphi 0, %s159
      %s176 = sphi 0, %s160
    $region4: #{tpu_custom_call.1} parent=1 // loop_header_branch
      %18 = sbr.rel (%p16) target = $region8
    $region5: #{tpu_custom_call.1} parent=1 // loop_body
      %s20 = ssub.s32 %s15, 1
      %s21 = ssub.s32 %s15, 2
      %s22 = sadd.s32 %s15, 1
      %s23 = ssub.s32 %s15, %s22
      %p24 = scmp.eq.s32.totalorder %s23, 0
      %s26 = sadd.s32 %s25, 1
      %s27 = scalar_select %p24, %s25, %s26
      %p30 = pneg %p24
      %p31 = scmp.eq.s32.totalorder %s15, 1
      %p32 = por %p30, %p31
      %p33 = scmp.ne.s32.totalorder %s25, %s28
      %p34 = scmp.eq.s32.totalorder %s15, 0
      %p35 = por %p33, %p34
      %p36 = scmp.ne.s32.totalorder %s25, %s28
      %p37 = scmp.eq.s32.totalorder %s20, 1
      %p38 = por %p36, %p37
      %p39 = scmp.ne.s32.totalorder %s28, %s29
      %p40 = scmp.eq.s32.totalorder %s20, 0
      %p41 = por %p39, %p40
      %p42 = scmp.ne.s32.totalorder %s28, %s29
      %p43 = scmp.eq.s32.totalorder %s21, 1
      %p44 = por %p42, %p43
      %p46 = scmp.ne.s32.totalorder %s29, %s45
      %p47 = scmp.eq.s32.totalorder %s21, 0
      %p48 = por %p46, %p47
      %s50 = sadd.s32 %s49, 1
      %p53 = scmp.eq.s32.totalorder %s15, 1
      %p54 = scmp.ne.s32.totalorder %s49, %s51
      %p55 = scmp.eq.s32.totalorder %s15, 0
      %p56 = por %p54, %p55
      %p57 = scmp.ne.s32.totalorder %s49, %s51
      %p58 = scmp.eq.s32.totalorder %s20, 1
      %p59 = por %p57, %p58
      %p60 = scmp.ne.s32.totalorder %s51, %s52
      %p61 = scmp.eq.s32.totalorder %s20, 0
      %p62 = por %p60, %p61
      %p63 = scmp.ne.s32.totalorder %s51, %s52
      %p64 = scmp.eq.s32.totalorder %s21, 1
      %p65 = por %p63, %p64
      %p67 = scmp.ne.s32.totalorder %s52, %s66
      %p68 = scmp.eq.s32.totalorder %s21, 0
      %p69 = por %p67, %p68
      %s71 = sadd.s32 %s70, 1
      %p74 = scmp.eq.s32.totalorder %s15, 1
      %p75 = scmp.ne.s32.totalorder %s70, %s72
      %p76 = scmp.eq.s32.totalorder %s15, 0
      %p77 = por %p75, %p76
      %p78 = scmp.ne.s32.totalorder %s70, %s72
      %p79 = scmp.eq.s32.totalorder %s20, 1
      %p80 = por %p78, %p79
      %p81 = scmp.ne.s32.totalorder %s72, %s73
      %p82 = scmp.eq.s32.totalorder %s20, 0
      %p83 = por %p81, %p82
      %p84 = scmp.ne.s32.totalorder %s72, %s73
      %p85 = scmp.eq.s32.totalorder %s21, 1
      %p86 = por %p84, %p85
      %p88 = scmp.ne.s32.totalorder %s73, %s87
      %p89 = scmp.eq.s32.totalorder %s21, 0
      %p90 = por %p88, %p89
      %s92 = sadd.s32 %s91, 1
      %p95 = scmp.eq.s32.totalorder %s15, 1
      %p96 = scmp.ne.s32.totalorder %s91, %s93
      %p97 = scmp.eq.s32.totalorder %s15, 0
      %p98 = por %p96, %p97
      %p99 = scmp.ne.s32.totalorder %s91, %s93
      %p100 = scmp.eq.s32.totalorder %s20, 1
      %p101 = por %p99, %p100
      %p102 = scmp.ne.s32.totalorder %s93, %s94
      %p103 = scmp.eq.s32.totalorder %s20, 0
      %p104 = por %p102, %p103
      %p105 = scmp.ne.s32.totalorder %s93, %s94
      %p106 = scmp.eq.s32.totalorder %s21, 1
      %p107 = por %p105, %p106
      %p109 = scmp.ne.s32.totalorder %s94, %s108
      %p110 = scmp.eq.s32.totalorder %s21, 0
      %p111 = por %p109, %p110
      %s113 = sadd.s32 %s112, 1
      %p116 = scmp.eq.s32.totalorder %s15, 1
      %p117 = scmp.ne.s32.totalorder %s112, %s114
      %p118 = scmp.eq.s32.totalorder %s15, 0
      %p119 = por %p117, %p118
      %p120 = scmp.ne.s32.totalorder %s112, %s114
      %p121 = scmp.eq.s32.totalorder %s20, 1
      %p122 = por %p120, %p121
      %p123 = scmp.ne.s32.totalorder %s114, %s115
      %p124 = scmp.eq.s32.totalorder %s20, 0
      %p125 = por %p123, %p124
      %p126 = scmp.ne.s32.totalorder %s114, %s115
      %p127 = scmp.eq.s32.totalorder %s21, 1
      %p128 = por %p126, %p127
      %p130 = scmp.ne.s32.totalorder %s115, %s129
      %p131 = scmp.eq.s32.totalorder %s21, 0
      %p132 = por %p130, %p131
      %s134 = sadd.s32 %s133, 1
      %p137 = scmp.eq.s32.totalorder %s15, 1
      %p138 = scmp.ne.s32.totalorder %s133, %s135
      %p139 = scmp.eq.s32.totalorder %s15, 0
      %p140 = por %p138, %p139
      %p141 = scmp.ne.s32.totalorder %s133, %s135
      %p142 = scmp.eq.s32.totalorder %s20, 1
      %p143 = por %p141, %p142
      %p144 = scmp.ne.s32.totalorder %s135, %s136
      %p145 = scmp.eq.s32.totalorder %s20, 0
      %p146 = por %p144, %p145
      %p147 = scmp.ne.s32.totalorder %s135, %s136
      %p148 = scmp.eq.s32.totalorder %s21, 1
      %p149 = por %p147, %p148
      %p151 = scmp.ne.s32.totalorder %s136, %s150
      %p152 = scmp.eq.s32.totalorder %s21, 0
      %p153 = por %p151, %p152
      %s154 = ssub.s32 %s15, %s22
      %p155 = scmp.eq.s32.totalorder %s154, 0
      %s157 = sadd.s32 %s156, 1
      %s158 = scalar_select %p155, %s156, %s157
      %p161 = pneg %p155
      %p162 = scmp.eq.s32.totalorder %s15, 1
      %p163 = por %p161, %p162
      %p164 = scmp.ne.s32.totalorder %s156, %s159
      %p165 = scmp.eq.s32.totalorder %s15, 0
      %p166 = por %p164, %p165
      %p167 = scmp.ne.s32.totalorder %s156, %s159
      %p168 = scmp.eq.s32.totalorder %s20, 1
      %p169 = por %p167, %p168
      %p170 = scmp.ne.s32.totalorder %s159, %s160
      %p171 = scmp.eq.s32.totalorder %s20, 0
      %p172 = por %p170, %p171
      %p173 = scmp.ne.s32.totalorder %s159, %s160
      %p174 = scmp.eq.s32.totalorder %s21, 1
      %p175 = por %p173, %p174
      %p177 = scmp.ne.s32.totalorder %s160, %s176
      %p178 = scmp.eq.s32.totalorder %s21, 0
      %p179 = por %p177, %p178
      %p180 = scmp.le.s32.totalorder 1, %s15
      %p181 = scmp.lt.s32.totalorder %s15, 3
      %p182 = pnand %p180, %p181
      %p183 = pneg %p182
      // Predicated region
      $region9: #{tpu_custom_call.1} parent=5 // pred_check
        _
      $region10: #{tpu_custom_call.1} parent=5 // pred_check_branch
        %185 = sbr.rel (%p182) target = $region12
      $region11: #{tpu_custom_call.1} parent=5 // pred_region
        %s186 = ssub.s32 %s15, 1
        // Predicated region
        $region13: #{tpu_custom_call.1} parent=11 // pred_check
          %p187 = pneg %p62
        $region14: #{tpu_custom_call.1} parent=11 // pred_check_branch
          %189 = sbr.rel (%p187) target = $region16
        $region15: #{tpu_custom_call.1} parent=11 // pred_region
          _
        $region16: #{tpu_custom_call.1} parent=11 // pred_fallthru
          _
        // Predicated region
        $region17: #{tpu_custom_call.1} parent=11 // pred_check
          %p190 = pneg %p83
        $region18: #{tpu_custom_call.1} parent=11 // pred_check_branch
          %192 = sbr.rel (%p190) target = $region20
        $region19: #{tpu_custom_call.1} parent=11 // pred_region
          _
        $region20: #{tpu_custom_call.1} parent=11 // pred_fallthru
          _
        // Predicated region
        $region21: #{tpu_custom_call.1} parent=11 // pred_check
          %p193 = pneg %p104
        $region22: #{tpu_custom_call.1} parent=11 // pred_check_branch
          %195 = sbr.rel (%p193) target = $region24
        $region23: #{tpu_custom_call.1} parent=11 // pred_region
          _
        $region24: #{tpu_custom_call.1} parent=11 // pred_fallthru
          _
        // Predicated region
        $region25: #{tpu_custom_call.1} parent=11 // pred_check
          %p196 = pneg %p125
        $region26: #{tpu_custom_call.1} parent=11 // pred_check_branch
          %198 = sbr.rel (%p196) target = $region28
        $region27: #{tpu_custom_call.1} parent=11 // pred_region
          _
        $region28: #{tpu_custom_call.1} parent=11 // pred_fallthru
          _
        // Predicated region
        $region29: #{tpu_custom_call.1} parent=11 // pred_check
          %p199 = pneg %p146
        $region30: #{tpu_custom_call.1} parent=11 // pred_check_branch
          %201 = sbr.rel (%p199) target = $region32
        $region31: #{tpu_custom_call.1} parent=11 // pred_region
          _
        $region32: #{tpu_custom_call.1} parent=11 // pred_fallthru
          _
      $region12: #{tpu_custom_call.1} parent=5 // pred_fallthru
        _
      %p202 = scmp.lt.s32.totalorder %s15, 2
      // Predicated region
      $region33: #{tpu_custom_call.1} parent=5 // pred_check
        %p203 = pneg %p202
      $region34: #{tpu_custom_call.1} parent=5 // pred_check_branch
        %205 = sbr.rel (%p203) target = $region36
      $region35: #{tpu_custom_call.1} parent=5 // pred_region
        // Predicated region
        $region37: #{tpu_custom_call.1} parent=35 // pred_check
          %p206 = pneg %p35
        $region38: #{tpu_custom_call.1} parent=35 // pred_check_branch
          %208 = sbr.rel (%p206) target = $region40
        $region39: #{tpu_custom_call.1} parent=35 // pred_region
          %p209 = scmp.lt.s32.totalorder %s15, 1
          %s210 = scalar_select %p209, %s15, 1
          %s211 = smul.addr %s210, 8
          %s212 = scalar_lea.vmem %s0, %s211
        $region40: #{tpu_custom_call.1} parent=35 // pred_fallthru
          _
      $region36: #{tpu_custom_call.1} parent=5 // pred_fallthru
        _
      %p213 = scmp.le.s32.totalorder 1, %s15
      %p214 = scmp.lt.s32.totalorder %s15, 3
      %p215 = pnand %p213, %p214
      %p216 = pneg %p215
      // Predicated region
      $region41: #{tpu_custom_call.1} parent=5 // pred_check
        _
      $region42: #{tpu_custom_call.1} parent=5 // pred_check_branch
        %218 = sbr.rel (%p215) target = $region44
      $region43: #{tpu_custom_call.1} parent=5 // pred_region
        %s219 = ssub.s32 %s15, 1
        %p220 = scmp.lt.s32.totalorder %s20, 1
        %s221 = scalar_select %p220, %s20, 1
        %s222 = smul.addr %s221, 8
        %s223 = scalar_lea.vmem %s0, %s222
        %p224 = pneg %p41
        %p225 = pneg %p38
        %p226 = pneg %p62
        %p227 = pneg %p59
        %p228 = pneg %p83
        %p229 = pneg %p80
        %p230 = pneg %p104
        %p231 = pneg %p101
        %p232 = pneg %p125
        %p233 = pneg %p122
        %p234 = pneg %p146
        %p235 = pneg %p143
        %p236 = pneg %p172
        %p237 = pneg %p169
        %s238 = sand.u32 %s159, 1
        %s239 = scalar_lea.sflag [#allocation4], %s238
        %s240 = sand.u32 %s159, 1
        %s241 = smul.addr %s240, 8
        %s242 = scalar_lea.vmem [#allocation3], %s241
        %p243 = scmp.lt.s32.totalorder %s20, 1
        %s244 = scalar_select %p243, %s20, 1
        %s245 = smul.addr %s244, 8
        %s246 = scalar_lea.vmem %s0, %s245
        %v248 = vld [vmem:[%s246] sm:$0xff]
        %v249 = vpack.c.bf16 %v248, %v248
        %vm250 = vcmask 261120
        %251 = vst.msk [vmem:[#allocation2] sm:$0xff] %vm250, 0.0
        %v252 = vld [vmem:[%s1] sm:$0xf]
        %v253 = vld [vmem:[%s1 + $0x4] sm:$0xf]
        %v254 = vld [vmem:[%s1 + $0x8] sm:$0xf]
        %v255 = vld [vmem:[%s1 + $0xc] sm:$0xf]
        %v256 = vld [vmem:[%s2] sm:$0xf]
        %v257 = vld [vmem:[%s2 + $0x4] sm:$0xf]
        %v258 = vld [vmem:[%s2 + $0x8] sm:$0xf]
        %v259 = vld [vmem:[%s2 + $0xc] sm:$0xf]
        %v260 = vld [vmem:[%s3] sm:$0xf]
        %v261 = vld [vmem:[%s3 + $0x4] sm:$0xf]
        %v262 = vld [vmem:[%s3 + $0x8] sm:$0xf]
        %v263 = vld [vmem:[%s3 + $0xc] sm:$0xf]
        %v268 = vunpack.c.l.b16 %v252
        %v269 = vunpack.c.l.b16 %v253
        %v270 = vunpack.c.l.b16 %v254
        %v271 = vunpack.c.l.b16 %v255
        %v272 = vpack.c.b16 %v269, %v268
        %v273 = vpack.c.b16 %v271, %v270
        %v277 = vsel %vm250, %v249, 0
        %279 = vmatpush.bf16.msra.mxu0 0
        %280 = vmatpush.bf16.msra.mxu0 0
        %281 = vmatpush.bf16.msra.mxu0 0
        %282 = vmatpush.bf16.msra.mxu0 0
        %283 = vmatpush.bf16.msra.mxu0 0
        %284 = vmatpush.bf16.msra.mxu0 0
        %285 = vmatpush.bf16.msra.mxu0 %v273
        %286 = vmatpush.bf16.msra.mxu0 %v272
        %287 = vmatmul.bf16.gmra.mxu0 %v277
        %v288 = vpop.f32.mrf.mxu0
        %v289 = vadd.f32 0.0, %v288
        %v290 = vpop.f32.mrf.mxu0
        %291 = vdwg.mxu0
        %v296 = vunpack.c.l.b16 %v256
        %v297 = vunpack.c.l.b16 %v257
        %v298 = vunpack.c.l.b16 %v258
        %v299 = vunpack.c.l.b16 %v259
        %v300 = vpack.c.b16 %v297, %v296
        %v301 = vpack.c.b16 %v299, %v298
        %304 = vmatpush.bf16.msra.mxu0 0
        %305 = vmatpush.bf16.msra.mxu0 0
        %306 = vmatpush.bf16.msra.mxu0 0
        %307 = vmatpush.bf16.msra.mxu0 0
        %308 = vmatpush.bf16.msra.mxu0 0
        %309 = vmatpush.bf16.msra.mxu0 0
        %310 = vmatpush.bf16.msra.mxu0 %v301
        %311 = vmatpush.bf16.msra.mxu0 %v300
        %312 = vmatmul.bf16.gmra.mxu0 %v277
        %v313 = vpop.f32.mrf.mxu0
        %v314 = vadd.f32 0.0, %v313
        %v315 = vpop.f32.mrf.mxu0
        %316 = vdwg.mxu0
        %v321 = vunpack.c.l.b16 %v260
        %v322 = vunpack.c.l.b16 %v261
        %v323 = vunpack.c.l.b16 %v262
        %v324 = vunpack.c.l.b16 %v263
        %v325 = vpack.c.b16 %v322, %v321
        %v326 = vpack.c.b16 %v324, %v323
        %329 = vmatpush.bf16.msra.mxu0 0
        %330 = vmatpush.bf16.msra.mxu0 0
        %331 = vmatpush.bf16.msra.mxu0 0
        %332 = vmatpush.bf16.msra.mxu0 0
        %333 = vmatpush.bf16.msra.mxu0 0
        %334 = vmatpush.bf16.msra.mxu0 0
        %335 = vmatpush.bf16.msra.mxu0 %v326
        %336 = vmatpush.bf16.msra.mxu0 %v325
        %337 = vmatmul.bf16.gmra.mxu0 %v277
        %v338 = vpop.f32.mrf.mxu0
        %v339 = vadd.f32 0.0, %v338
        %v340 = vpop.f32.mrf.mxu0
        %341 = vdwg.mxu0
        %v342 = vpack.c.bf16 %v289, %v289
        %v343 = vpack.c.bf16 %v314, %v314
        %vm344 = vcmask 31744
        %v346 = vsel %vm344, %v342, 0
        %v349 = vsel %vm344, %v343, 0
        %351 = vmatpush.bf16.xpose.msra.mxu0 0
        %352 = vmatpush.bf16.xpose.msra.mxu0 0
        %353 = vmatpush.bf16.xpose.msra.mxu0 0
        %354 = vmatpush.bf16.xpose.msra.mxu0 0
        %355 = vmatpush.bf16.xpose.msra.mxu0 0
        %356 = vmatpush.bf16.xpose.msra.mxu0 0
        %357 = vmatpush.bf16.xpose.msra.mxu0 0
        %358 = vmatpush.bf16.xpose.msra.mxu0 %v349
        %359 = vmatmul.bf16.gmra.mxu0 %v346
        %v360 = vpop.f32.mrf.mxu0
        %v361 = vadd.f32 0.0, %v360
        %v362 = vpop.f32.mrf.mxu0
        %363 = vdwg.mxu0
        %vm364 = vcmask 64512
        %v365 = vsel %vm364, %v361, -inf
        %366 = vmax.xlane.f32.xlu0 %v365
        %v367 = vpop.xlane.xlu0 %366
        %v368 = vsub.f32 %v361, %v367
        %v369 = vmul.f32 %v368, 1.442695
        %v370 = vpow.pop %v369
        %v371 = vsel %vm364, %v370, 0.0
        %372 = vadd.xlane.f32.xlu0 %v371
        %v373 = vpop.xlane.xlu0 %372
        %v374 = vrcp.pop %v373
        %v375 = vmul.f32 %v373, %v374
        %v376 = vsub.f32 1.0, %v375
        %v377 = vmul.f32 %v374, %v376
        %v378 = vadd.f32 %v374, %v377
        %vm379 = vweird.f32 %v373
        %vm380 = vweird.f32 %v374
        %vm381 = vmor %vm379, %vm380
        %v382 = vsel %vm381, %v374, %v378
        %v383 = vand.u32 2147483647, %v373
        %vm384 = vcmp.eq.f32.partialorder %v383, 8.507059e+37
        %v385 = vand.u32 %v373, 2147483648
        %v386 = vor.u32 1.1754944e-38, %v385
        %v387 = vsel %vm384, %v386, %v382
        %v388 = vmul.f32 %v370, %v387
        %v389 = vpack.c.bf16 %v388, %v388
        %v390 = vpack.c.bf16 %v339, %v339
        %v392 = vsel %vm364, %v389, 0
        %vm394 = vcmask 1043456
        %v396 = vsel %vm394, %v390, 0
        %398 = vmatpush.bf16.msra.mxu0 0
        %399 = vmatpush.bf16.msra.mxu0 0
        %400 = vmatpush.bf16.msra.mxu0 0
        %401 = vmatpush.bf16.msra.mxu0 0
        %402 = vmatpush.bf16.msra.mxu0 0
        %403 = vmatpush.bf16.msra.mxu0 0
        %404 = vmatpush.bf16.msra.mxu0 0
        %405 = vmatpush.bf16.msra.mxu0 %v396
        %406 = vmatmul.bf16.gmra.mxu0 %v392
        %v407 = vpop.f32.mrf.mxu0
        %v408 = vadd.f32 0.0, %v407
        %v409 = vpop.f32.mrf.mxu0
        %410 = vdwg.mxu0
        %v411 = vld [vmem:[#allocation2] sm:$0xff]
        %v412 = vpack.c.bf16 %v408, %v408
        %v413 = vld [vmem:[%s4] sm:$0x3]
        %v415 = vsel %vm344, %v412, 0
        %vm417 = vcmask 1041408
        %v419 = vsel %vm417, %v413, 0
        %421 = vmatpush.bf16.msra.mxu0 0
        %422 = vmatpush.bf16.msra.mxu0 0
        %423 = vmatpush.bf16.msra.mxu0 0
        %424 = vmatpush.bf16.msra.mxu0 0
        %425 = vmatpush.bf16.msra.mxu0 0
        %426 = vmatpush.bf16.msra.mxu0 0
        %427 = vmatpush.bf16.msra.mxu0 0
        %428 = vmatpush.bf16.msra.mxu0 %v419
        %429 = vmatmul.bf16.gmra.mxu0 %v415
        %v430 = vpop.f32.mrf.mxu0
        %v431 = vadd.f32 0.0, %v430
        %v432 = vpop.f32.mrf.mxu0
        %433 = vdwg.mxu0
        %v434 = vadd.f32 %v411, %v431
        %435 = vst.msk [vmem:[#allocation2] sm:$0xff] %vm250, %v434
        %s436 = scalar_lea.vmem %s1, 16
        %v437 = vld [vmem:[%s436] sm:$0xf]
        %v438 = vld [vmem:[%s436 + $0x4] sm:$0xf]
        %v439 = vld [vmem:[%s436 + $0x8] sm:$0xf]
        %v440 = vld [vmem:[%s436 + $0xc] sm:$0xf]
        %s441 = scalar_lea.vmem %s2, 16
        %v442 = vld [vmem:[%s441] sm:$0xf]
        %v443 = vld [vmem:[%s441 + $0x4] sm:$0xf]
        %v444 = vld [vmem:[%s441 + $0x8] sm:$0xf]
        %v445 = vld [vmem:[%s441 + $0xc] sm:$0xf]
        %s446 = scalar_lea.vmem %s3, 16
        %v447 = vld [vmem:[%s446] sm:$0xf]
        %v448 = vld [vmem:[%s446 + $0x4] sm:$0xf]
        %v449 = vld [vmem:[%s446 + $0x8] sm:$0xf]
        %v450 = vld [vmem:[%s446 + $0xc] sm:$0xf]
        %v455 = vunpack.c.l.b16 %v437
        %v456 = vunpack.c.l.b16 %v438
        %v457 = vunpack.c.l.b16 %v439
        %v458 = vunpack.c.l.b16 %v440
        %v459 = vpack.c.b16 %v456, %v455
        %v460 = vpack.c.b16 %v458, %v457
        %463 = vmatpush.bf16.msra.mxu0 0
        %464 = vmatpush.bf16.msra.mxu0 0
        %465 = vmatpush.bf16.msra.mxu0 0
        %466 = vmatpush.bf16.msra.mxu0 0
        %467 = vmatpush.bf16.msra.mxu0 0
        %468 = vmatpush.bf16.msra.mxu0 0
        %469 = vmatpush.bf16.msra.mxu0 %v460
        %470 = vmatpush.bf16.msra.mxu0 %v459
        %471 = vmatmul.bf16.gmra.mxu0 %v277
        %v472 = vpop.f32.mrf.mxu0
        %v473 = vadd.f32 0.0, %v472
        %v474 = vpop.f32.mrf.mxu0
        %475 = vdwg.mxu0
        %v480 = vunpack.c.l.b16 %v442
        %v481 = vunpack.c.l.b16 %v443
        %v482 = vunpack.c.l.b16 %v444
        %v483 = vunpack.c.l.b16 %v445
        %v484 = vpack.c.b16 %v481, %v480
        %v485 = vpack.c.b16 %v483, %v482
        %488 = vmatpush.bf16.msra.mxu0 0
        %489 = vmatpush.bf16.msra.mxu0 0
        %490 = vmatpush.bf16.msra.mxu0 0
        %491 = vmatpush.bf16.msra.mxu0 0
        %492 = vmatpush.bf16.msra.mxu0 0
        %493 = vmatpush.bf16.msra.mxu0 0
        %494 = vmatpush.bf16.msra.mxu0 %v485
        %495 = vmatpush.bf16.msra.mxu0 %v484
        %496 = vmatmul.bf16.gmra.mxu0 %v277
        %v497 = vpop.f32.mrf.mxu0
        %v498 = vadd.f32 0.0, %v497
        %v499 = vpop.f32.mrf.mxu0
        %500 = vdwg.mxu0
        %v505 = vunpack.c.l.b16 %v447
        %v506 = vunpack.c.l.b16 %v448
        %v507 = vunpack.c.l.b16 %v449
        %v508 = vunpack.c.l.b16 %v450
        %v509 = vpack.c.b16 %v506, %v505
        %v510 = vpack.c.b16 %v508, %v507
        %513 = vmatpush.bf16.msra.mxu0 0
        %514 = vmatpush.bf16.msra.mxu0 0
        %515 = vmatpush.bf16.msra.mxu0 0
        %516 = vmatpush.bf16.msra.mxu0 0
        %517 = vmatpush.bf16.msra.mxu0 0
        %518 = vmatpush.bf16.msra.mxu0 0
        %519 = vmatpush.bf16.msra.mxu0 %v510
        %520 = vmatpush.bf16.msra.mxu0 %v509
        %521 = vmatmul.bf16.gmra.mxu0 %v277
        %v522 = vpop.f32.mrf.mxu0
        %v523 = vadd.f32 0.0, %v522
        %v524 = vpop.f32.mrf.mxu0
        %525 = vdwg.mxu0
        %v526 = vpack.c.bf16 %v473, %v473
        %v527 = vpack.c.bf16 %v498, %v498
        %v529 = vsel %vm344, %v526, 0
        %v532 = vsel %vm344, %v527, 0
        %534 = vmatpush.bf16.xpose.msra.mxu0 0
        %535 = vmatpush.bf16.xpose.msra.mxu0 0
        %536 = vmatpush.bf16.xpose.msra.mxu0 0
        %537 = vmatpush.bf16.xpose.msra.mxu0 0
        %538 = vmatpush.bf16.xpose.msra.mxu0 0
        %539 = vmatpush.bf16.xpose.msra.mxu0 0
        %540 = vmatpush.bf16.xpose.msra.mxu0 0
        %541 = vmatpush.bf16.xpose.msra.mxu0 %v532
        %542 = vmatmul.bf16.gmra.mxu0 %v529
        %v543 = vpop.f32.mrf.mxu0
        %v544 = vadd.f32 0.0, %v543
        %v545 = vpop.f32.mrf.mxu0
        %546 = vdwg.mxu0
        %v547 = vsel %vm364, %v544, -inf
        %548 = vmax.xlane.f32.xlu0 %v547
        %v549 = vpop.xlane.xlu0 %548
        %v550 = vsub.f32 %v544, %v549
        %v551 = vmul.f32 %v550, 1.442695
        %v552 = vpow.pop %v551
        %v553 = vsel %vm364, %v552, 0.0
        %554 = vadd.xlane.f32.xlu0 %v553
        %v555 = vpop.xlane.xlu0 %554
        %v556 = vrcp.pop %v555
        %v557 = vmul.f32 %v555, %v556
        %v558 = vsub.f32 1.0, %v557
        %v559 = vmul.f32 %v556, %v558
        %v560 = vadd.f32 %v556, %v559
        %vm561 = vweird.f32 %v555
        %vm562 = vweird.f32 %v556
        %vm563 = vmor %vm561, %vm562
        %v564 = vsel %vm563, %v556, %v560
        %v565 = vand.u32 2147483647, %v555
        %vm566 = vcmp.eq.f32.partialorder %v565, 8.507059e+37
        %v567 = vand.u32 %v555, 2147483648
        %v568 = vor.u32 1.1754944e-38, %v567
        %v569 = vsel %vm566, %v568, %v564
        %v570 = vmul.f32 %v552, %v569
        %v571 = vpack.c.bf16 %v570, %v570
        %v572 = vpack.c.bf16 %v523, %v523
        %v574 = vsel %vm364, %v571, 0
        %v577 = vsel %vm394, %v572, 0
        %579 = vmatpush.bf16.msra.mxu0 0
        %580 = vmatpush.bf16.msra.mxu0 0
        %581 = vmatpush.bf16.msra.mxu0 0
        %582 = vmatpush.bf16.msra.mxu0 0
        %583 = vmatpush.bf16.msra.mxu0 0
        %584 = vmatpush.bf16.msra.mxu0 0
        %585 = vmatpush.bf16.msra.mxu0 0
        %586 = vmatpush.bf16.msra.mxu0 %v577
        %587 = vmatmul.bf16.gmra.mxu0 %v574
        %v588 = vpop.f32.mrf.mxu0
        %v589 = vadd.f32 0.0, %v588
        %v590 = vpop.f32.mrf.mxu0
        %591 = vdwg.mxu0
        %v592 = vld [vmem:[#allocation2] sm:$0xff]
        %v593 = vpack.c.bf16 %v589, %v589
        %s594 = scalar_lea.vmem %s4, 2
        %v595 = vld [vmem:[%s594] sm:$0x3]
        %v597 = vsel %vm344, %v593, 0
        %v600 = vsel %vm417, %v595, 0
        %602 = vmatpush.bf16.msra.mxu0 0
        %603 = vmatpush.bf16.msra.mxu0 0
        %604 = vmatpush.bf16.msra.mxu0 0
        %605 = vmatpush.bf16.msra.mxu0 0
        %606 = vmatpush.bf16.msra.mxu0 0
        %607 = vmatpush.bf16.msra.mxu0 0
        %608 = vmatpush.bf16.msra.mxu0 0
        %609 = vmatpush.bf16.msra.mxu0 %v600
        %610 = vmatmul.bf16.gmra.mxu0 %v597
        %v611 = vpop.f32.mrf.mxu0
        %v612 = vadd.f32 0.0, %v611
        %v613 = vpop.f32.mrf.mxu0
        %614 = vdwg.mxu0
        %v615 = vadd.f32 %v592, %v612
        %616 = vst.msk [vmem:[#allocation2] sm:$0xff] %vm250, %v615
        %s617 = scalar_lea.vmem %s1, 32
        %v618 = vld [vmem:[%s617] sm:$0xf]
        %v619 = vld [vmem:[%s617 + $0x4] sm:$0xf]
        %v620 = vld [vmem:[%s617 + $0x8] sm:$0xf]
        %v621 = vld [vmem:[%s617 + $0xc] sm:$0xf]
        %s622 = scalar_lea.vmem %s2, 32
        %v623 = vld [vmem:[%s622] sm:$0xf]
        %v624 = vld [vmem:[%s622 + $0x4] sm:$0xf]
        %v625 = vld [vmem:[%s622 + $0x8] sm:$0xf]
        %v626 = vld [vmem:[%s622 + $0xc] sm:$0xf]
        %s627 = scalar_lea.vmem %s3, 32
        %v628 = vld [vmem:[%s627] sm:$0xf]
        %v629 = vld [vmem:[%s627 + $0x4] sm:$0xf]
        %v630 = vld [vmem:[%s627 + $0x8] sm:$0xf]
        %v631 = vld [vmem:[%s627 + $0xc] sm:$0xf]
        %v636 = vunpack.c.l.b16 %v618
        %v637 = vunpack.c.l.b16 %v619
        %v638 = vunpack.c.l.b16 %v620
        %v639 = vunpack.c.l.b16 %v621
        %v640 = vpack.c.b16 %v637, %v636
        %v641 = vpack.c.b16 %v639, %v638
        %644 = vmatpush.bf16.msra.mxu0 0
        %645 = vmatpush.bf16.msra.mxu0 0
        %646 = vmatpush.bf16.msra.mxu0 0
        %647 = vmatpush.bf16.msra.mxu0 0
        %648 = vmatpush.bf16.msra.mxu0 0
        %649 = vmatpush.bf16.msra.mxu0 0
        %650 = vmatpush.bf16.msra.mxu0 %v641
        %651 = vmatpush.bf16.msra.mxu0 %v640
        %652 = vmatmul.bf16.gmra.mxu0 %v277
        %v653 = vpop.f32.mrf.mxu0
        %v654 = vadd.f32 0.0, %v653
        %v655 = vpop.f32.mrf.mxu0
        %656 = vdwg.mxu0
        %v661 = vunpack.c.l.b16 %v623
        %v662 = vunpack.c.l.b16 %v624
        %v663 = vunpack.c.l.b16 %v625
        %v664 = vunpack.c.l.b16 %v626
        %v665 = vpack.c.b16 %v662, %v661
        %v666 = vpack.c.b16 %v664, %v663
        %669 = vmatpush.bf16.msra.mxu0 0
        %670 = vmatpush.bf16.msra.mxu0 0
        %671 = vmatpush.bf16.msra.mxu0 0
        %672 = vmatpush.bf16.msra.mxu0 0
        %673 = vmatpush.bf16.msra.mxu0 0
        %674 = vmatpush.bf16.msra.mxu0 0
        %675 = vmatpush.bf16.msra.mxu0 %v666
        %676 = vmatpush.bf16.msra.mxu0 %v665
        %677 = vmatmul.bf16.gmra.mxu0 %v277
        %v678 = vpop.f32.mrf.mxu0
        %v679 = vadd.f32 0.0, %v678
        %v680 = vpop.f32.mrf.mxu0
        %681 = vdwg.mxu0
        %v686 = vunpack.c.l.b16 %v628
        %v687 = vunpack.c.l.b16 %v629
        %v688 = vunpack.c.l.b16 %v630
        %v689 = vunpack.c.l.b16 %v631
        %v690 = vpack.c.b16 %v687, %v686
        %v691 = vpack.c.b16 %v689, %v688
        %694 = vmatpush.bf16.msra.mxu0 0
        %695 = vmatpush.bf16.msra.mxu0 0
        %696 = vmatpush.bf16.msra.mxu0 0
        %697 = vmatpush.bf16.msra.mxu0 0
        %698 = vmatpush.bf16.msra.mxu0 0
        %699 = vmatpush.bf16.msra.mxu0 0
        %700 = vmatpush.bf16.msra.mxu0 %v691
        %701 = vmatpush.bf16.msra.mxu0 %v690
        %702 = vmatmul.bf16.gmra.mxu0 %v277
        %v703 = vpop.f32.mrf.mxu0
        %v704 = vadd.f32 0.0, %v703
        %v705 = vpop.f32.mrf.mxu0
        %706 = vdwg.mxu0
        %v707 = vpack.c.bf16 %v654, %v654
        %v708 = vpack.c.bf16 %v679, %v679
        %v710 = vsel %vm344, %v707, 0
        %v713 = vsel %vm344, %v708, 0
        %715 = vmatpush.bf16.xpose.msra.mxu0 0
        %716 = vmatpush.bf16.xpose.msra.mxu0 0
        %717 = vmatpush.bf16.xpose.msra.mxu0 0
        %718 = vmatpush.bf16.xpose.msra.mxu0 0
        %719 = vmatpush.bf16.xpose.msra.mxu0 0
        %720 = vmatpush.bf16.xpose.msra.mxu0 0
        %721 = vmatpush.bf16.xpose.msra.mxu0 0
        %722 = vmatpush.bf16.xpose.msra.mxu0 %v713
        %723 = vmatmul.bf16.gmra.mxu0 %v710
        %v724 = vpop.f32.mrf.mxu0
        %v725 = vadd.f32 0.0, %v724
        %v726 = vpop.f32.mrf.mxu0
        %727 = vdwg.mxu0
        %v728 = vsel %vm364, %v725, -inf
        %729 = vmax.xlane.f32.xlu0 %v728
        %v730 = vpop.xlane.xlu0 %729
        %v731 = vsub.f32 %v725, %v730
        %v732 = vmul.f32 %v731, 1.442695
        %v733 = vpow.pop %v732
        %v734 = vsel %vm364, %v733, 0.0
        %735 = vadd.xlane.f32.xlu0 %v734
        %v736 = vpop.xlane.xlu0 %735
        %v737 = vrcp.pop %v736
        %v738 = vmul.f32 %v736, %v737
        %v739 = vsub.f32 1.0, %v738
        %v740 = vmul.f32 %v737, %v739
        %v741 = vadd.f32 %v737, %v740
        %vm742 = vweird.f32 %v736
        %vm743 = vweird.f32 %v737
        %vm744 = vmor %vm742, %vm743
        %v745 = vsel %vm744, %v737, %v741
        %v746 = vand.u32 2147483647, %v736
        %vm747 = vcmp.eq.f32.partialorder %v746, 8.507059e+37
        %v748 = vand.u32 %v736, 2147483648
        %v749 = vor.u32 1.1754944e-38, %v748
        %v750 = vsel %vm747, %v749, %v745
        %v751 = vmul.f32 %v733, %v750
        %v752 = vpack.c.bf16 %v751, %v751
        %v753 = vpack.c.bf16 %v704, %v704
        %v755 = vsel %vm364, %v752, 0
        %v758 = vsel %vm394, %v753, 0
        %760 = vmatpush.bf16.msra.mxu0 0
        %761 = vmatpush.bf16.msra.mxu0 0
        %762 = vmatpush.bf16.msra.mxu0 0
        %763 = vmatpush.bf16.msra.mxu0 0
        %764 = vmatpush.bf16.msra.mxu0 0
        %765 = vmatpush.bf16.msra.mxu0 0
        %766 = vmatpush.bf16.msra.mxu0 0
        %767 = vmatpush.bf16.msra.mxu0 %v758
        %768 = vmatmul.bf16.gmra.mxu0 %v755
        %v769 = vpop.f32.mrf.mxu0
        %v770 = vadd.f32 0.0, %v769
        %v771 = vpop.f32.mrf.mxu0
        %772 = vdwg.mxu0
        %v773 = vld [vmem:[#allocation2] sm:$0xff]
        %v774 = vpack.c.bf16 %v770, %v770
        %s775 = scalar_lea.vmem %s4, 4
        %v776 = vld [vmem:[%s775] sm:$0x3]
        %v778 = vsel %vm344, %v774, 0
        %v781 = vsel %vm417, %v776, 0
        %783 = vmatpush.bf16.msra.mxu0 0
        %784 = vmatpush.bf16.msra.mxu0 0
        %785 = vmatpush.bf16.msra.mxu0 0
        %786 = vmatpush.bf16.msra.mxu0 0
        %787 = vmatpush.bf16.msra.mxu0 0
        %788 = vmatpush.bf16.msra.mxu0 0
        %789 = vmatpush.bf16.msra.mxu0 0
        %790 = vmatpush.bf16.msra.mxu0 %v781
        %791 = vmatmul.bf16.gmra.mxu0 %v778
        %v792 = vpop.f32.mrf.mxu0
        %v793 = vadd.f32 0.0, %v792
        %v794 = vpop.f32.mrf.mxu0
        %795 = vdwg.mxu0
        %v796 = vadd.f32 %v773, %v793
        %797 = vst.msk [vmem:[#allocation2] sm:$0xff] %vm250, %v796
        %s798 = scalar_lea.vmem %s1, 48
        %v799 = vld [vmem:[%s798] sm:$0xf]
        %v800 = vld [vmem:[%s798 + $0x4] sm:$0xf]
        %v801 = vld [vmem:[%s798 + $0x8] sm:$0xf]
        %v802 = vld [vmem:[%s798 + $0xc] sm:$0xf]
        %s803 = scalar_lea.vmem %s2, 48
        %v804 = vld [vmem:[%s803] sm:$0xf]
        %v805 = vld [vmem:[%s803 + $0x4] sm:$0xf]
        %v806 = vld [vmem:[%s803 + $0x8] sm:$0xf]
        %v807 = vld [vmem:[%s803 + $0xc] sm:$0xf]
        %s808 = scalar_lea.vmem %s3, 48
        %v809 = vld [vmem:[%s808] sm:$0xf]
        %v810 = vld [vmem:[%s808 + $0x4] sm:$0xf]
        %v811 = vld [vmem:[%s808 + $0x8] sm:$0xf]
        %v812 = vld [vmem:[%s808 + $0xc] sm:$0xf]
        %v817 = vunpack.c.l.b16 %v799
        %v818 = vunpack.c.l.b16 %v800
        %v819 = vunpack.c.l.b16 %v801
        %v820 = vunpack.c.l.b16 %v802
        %v821 = vpack.c.b16 %v818, %v817
        %v822 = vpack.c.b16 %v820, %v819
        %825 = vmatpush.bf16.msra.mxu0 0
        %826 = vmatpush.bf16.msra.mxu0 0
        %827 = vmatpush.bf16.msra.mxu0 0
        %828 = vmatpush.bf16.msra.mxu0 0
        %829 = vmatpush.bf16.msra.mxu0 0
        %830 = vmatpush.bf16.msra.mxu0 0
        %831 = vmatpush.bf16.msra.mxu0 %v822
        %832 = vmatpush.bf16.msra.mxu0 %v821
        %833 = vmatmul.bf16.gmra.mxu0 %v277
        %v834 = vpop.f32.mrf.mxu0
        %v835 = vadd.f32 0.0, %v834
        %v836 = vpop.f32.mrf.mxu0
        %837 = vdwg.mxu0
        %v842 = vunpack.c.l.b16 %v804
        %v843 = vunpack.c.l.b16 %v805
        %v844 = vunpack.c.l.b16 %v806
        %v845 = vunpack.c.l.b16 %v807
        %v846 = vpack.c.b16 %v843, %v842
        %v847 = vpack.c.b16 %v845, %v844
        %850 = vmatpush.bf16.msra.mxu0 0
        %851 = vmatpush.bf16.msra.mxu0 0
        %852 = vmatpush.bf16.msra.mxu0 0
        %853 = vmatpush.bf16.msra.mxu0 0
        %854 = vmatpush.bf16.msra.mxu0 0
        %855 = vmatpush.bf16.msra.mxu0 0
        %856 = vmatpush.bf16.msra.mxu0 %v847
        %857 = vmatpush.bf16.msra.mxu0 %v846
        %858 = vmatmul.bf16.gmra.mxu0 %v277
        %v859 = vpop.f32.mrf.mxu0
        %v860 = vadd.f32 0.0, %v859
        %v861 = vpop.f32.mrf.mxu0
        %862 = vdwg.mxu0
        %v867 = vunpack.c.l.b16 %v809
        %v868 = vunpack.c.l.b16 %v810
        %v869 = vunpack.c.l.b16 %v811
        %v870 = vunpack.c.l.b16 %v812
        %v871 = vpack.c.b16 %v868, %v867
        %v872 = vpack.c.b16 %v870, %v869
        %875 = vmatpush.bf16.msra.mxu0 0
        %876 = vmatpush.bf16.msra.mxu0 0
        %877 = vmatpush.bf16.msra.mxu0 0
        %878 = vmatpush.bf16.msra.mxu0 0
        %879 = vmatpush.bf16.msra.mxu0 0
        %880 = vmatpush.bf16.msra.mxu0 0
        %881 = vmatpush.bf16.msra.mxu0 %v872
        %882 = vmatpush.bf16.msra.mxu0 %v871
        %883 = vmatmul.bf16.gmra.mxu0 %v277
        %v884 = vpop.f32.mrf.mxu0
        %v885 = vadd.f32 0.0, %v884
        %v886 = vpop.f32.mrf.mxu0
        %887 = vdwg.mxu0
        %v888 = vpack.c.bf16 %v835, %v835
        %v889 = vpack.c.bf16 %v860, %v860
        %v891 = vsel %vm344, %v888, 0
        %v894 = vsel %vm344, %v889, 0
        %896 = vmatpush.bf16.xpose.msra.mxu0 0
        %897 = vmatpush.bf16.xpose.msra.mxu0 0
        %898 = vmatpush.bf16.xpose.msra.mxu0 0
        %899 = vmatpush.bf16.xpose.msra.mxu0 0
        %900 = vmatpush.bf16.xpose.msra.mxu0 0
        %901 = vmatpush.bf16.xpose.msra.mxu0 0
        %902 = vmatpush.bf16.xpose.msra.mxu0 0
        %903 = vmatpush.bf16.xpose.msra.mxu0 %v894
        %904 = vmatmul.bf16.gmra.mxu0 %v891
        %v905 = vpop.f32.mrf.mxu0
        %v906 = vadd.f32 0.0, %v905
        %v907 = vpop.f32.mrf.mxu0
        %908 = vdwg.mxu0
        %v909 = vsel %vm364, %v906, -inf
        %910 = vmax.xlane.f32.xlu0 %v909
        %v911 = vpop.xlane.xlu0 %910
        %v912 = vsub.f32 %v906, %v911
        %v913 = vmul.f32 %v912, 1.442695
        %v914 = vpow.pop %v913
        %v915 = vsel %vm364, %v914, 0.0
        %916 = vadd.xlane.f32.xlu0 %v915
        %v917 = vpop.xlane.xlu0 %916
        %v918 = vrcp.pop %v917
        %v919 = vmul.f32 %v917, %v918
        %v920 = vsub.f32 1.0, %v919
        %v921 = vmul.f32 %v918, %v920
        %v922 = vadd.f32 %v918, %v921
        %vm923 = vweird.f32 %v917
        %vm924 = vweird.f32 %v918
        %vm925 = vmor %vm923, %vm924
        %v926 = vsel %vm925, %v918, %v922
        %v927 = vand.u32 2147483647, %v917
        %vm928 = vcmp.eq.f32.partialorder %v927, 8.507059e+37
        %v929 = vand.u32 %v917, 2147483648
        %v930 = vor.u32 1.1754944e-38, %v929
        %v931 = vsel %vm928, %v930, %v926
        %v932 = vmul.f32 %v914, %v931
        %v933 = vpack.c.bf16 %v932, %v932
        %v934 = vpack.c.bf16 %v885, %v885
        %v936 = vsel %vm364, %v933, 0
        %v939 = vsel %vm394, %v934, 0
        %941 = vmatpush.bf16.msra.mxu0 0
        %942 = vmatpush.bf16.msra.mxu0 0
        %943 = vmatpush.bf16.msra.mxu0 0
        %944 = vmatpush.bf16.msra.mxu0 0
        %945 = vmatpush.bf16.msra.mxu0 0
        %946 = vmatpush.bf16.msra.mxu0 0
        %947 = vmatpush.bf16.msra.mxu0 0
        %948 = vmatpush.bf16.msra.mxu0 %v939
        %949 = vmatmul.bf16.gmra.mxu0 %v936
        %v950 = vpop.f32.mrf.mxu0
        %v951 = vadd.f32 0.0, %v950
        %v952 = vpop.f32.mrf.mxu0
        %953 = vdwg.mxu0
        %v954 = vld [vmem:[#allocation2] sm:$0xff]
        %v955 = vpack.c.bf16 %v951, %v951
        %s956 = scalar_lea.vmem %s4, 6
        %v957 = vld [vmem:[%s956] sm:$0x3]
        %v959 = vsel %vm344, %v955, 0
        %v962 = vsel %vm417, %v957, 0
        %964 = vmatpush.bf16.msra.mxu0 0
        %965 = vmatpush.bf16.msra.mxu0 0
        %966 = vmatpush.bf16.msra.mxu0 0
        %967 = vmatpush.bf16.msra.mxu0 0
        %968 = vmatpush.bf16.msra.mxu0 0
        %969 = vmatpush.bf16.msra.mxu0 0
        %970 = vmatpush.bf16.msra.mxu0 0
        %971 = vmatpush.bf16.msra.mxu0 %v962
        %972 = vmatmul.bf16.gmra.mxu0 %v959
        %v973 = vpop.f32.mrf.mxu0
        %v974 = vadd.f32 0.0, %v973
        %v975 = vpop.f32.mrf.mxu0
        %976 = vdwg.mxu0
        %v977 = vadd.f32 %v954, %v974
        %978 = vst.msk [vmem:[#allocation2] sm:$0xff] %vm250, %v977
        %s979 = scalar_lea.vmem %s1, 64
        %v980 = vld [vmem:[%s979] sm:$0xf]
        %v981 = vld [vmem:[%s979 + $0x4] sm:$0xf]
        %v982 = vld [vmem:[%s979 + $0x8] sm:$0xf]
        %v983 = vld [vmem:[%s979 + $0xc] sm:$0xf]
        %s984 = scalar_lea.vmem %s2, 64
        %v985 = vld [vmem:[%s984] sm:$0xf]
        %v986 = vld [vmem:[%s984 + $0x4] sm:$0xf]
        %v987 = vld [vmem:[%s984 + $0x8] sm:$0xf]
        %v988 = vld [vmem:[%s984 + $0xc] sm:$0xf]
        %s989 = scalar_lea.vmem %s3, 64
        %v990 = vld [vmem:[%s989] sm:$0xf]
        %v991 = vld [vmem:[%s989 + $0x4] sm:$0xf]
        %v992 = vld [vmem:[%s989 + $0x8] sm:$0xf]
        %v993 = vld [vmem:[%s989 + $0xc] sm:$0xf]
        %v998 = vunpack.c.l.b16 %v980
        %v999 = vunpack.c.l.b16 %v981
        %v1000 = vunpack.c.l.b16 %v982
        %v1001 = vunpack.c.l.b16 %v983
        %v1002 = vpack.c.b16 %v999, %v998
        %v1003 = vpack.c.b16 %v1001, %v1000
        %1006 = vmatpush.bf16.msra.mxu0 0
        %1007 = vmatpush.bf16.msra.mxu0 0
        %1008 = vmatpush.bf16.msra.mxu0 0
        %1009 = vmatpush.bf16.msra.mxu0 0
        %1010 = vmatpush.bf16.msra.mxu0 0
        %1011 = vmatpush.bf16.msra.mxu0 0
        %1012 = vmatpush.bf16.msra.mxu0 %v1003
        %1013 = vmatpush.bf16.msra.mxu0 %v1002
        %1014 = vmatmul.bf16.gmra.mxu0 %v277
        %v1015 = vpop.f32.mrf.mxu0
        %v1016 = vadd.f32 0.0, %v1015
        %v1017 = vpop.f32.mrf.mxu0
        %1018 = vdwg.mxu0
        %v1023 = vunpack.c.l.b16 %v985
        %v1024 = vunpack.c.l.b16 %v986
        %v1025 = vunpack.c.l.b16 %v987
        %v1026 = vunpack.c.l.b16 %v988
        %v1027 = vpack.c.b16 %v1024, %v1023
        %v1028 = vpack.c.b16 %v1026, %v1025
        %1031 = vmatpush.bf16.msra.mxu0 0
        %1032 = vmatpush.bf16.msra.mxu0 0
        %1033 = vmatpush.bf16.msra.mxu0 0
        %1034 = vmatpush.bf16.msra.mxu0 0
        %1035 = vmatpush.bf16.msra.mxu0 0
        %1036 = vmatpush.bf16.msra.mxu0 0
        %1037 = vmatpush.bf16.msra.mxu0 %v1028
        %1038 = vmatpush.bf16.msra.mxu0 %v1027
        %1039 = vmatmul.bf16.gmra.mxu0 %v277
        %v1040 = vpop.f32.mrf.mxu0
        %v1041 = vadd.f32 0.0, %v1040
        %v1042 = vpop.f32.mrf.mxu0
        %1043 = vdwg.mxu0
        %v1048 = vunpack.c.l.b16 %v990
        %v1049 = vunpack.c.l.b16 %v991
        %v1050 = vunpack.c.l.b16 %v992
        %v1051 = vunpack.c.l.b16 %v993
        %v1052 = vpack.c.b16 %v1049, %v1048
        %v1053 = vpack.c.b16 %v1051, %v1050
        %1056 = vmatpush.bf16.msra.mxu0 0
        %1057 = vmatpush.bf16.msra.mxu0 0
        %1058 = vmatpush.bf16.msra.mxu0 0
        %1059 = vmatpush.bf16.msra.mxu0 0
        %1060 = vmatpush.bf16.msra.mxu0 0
        %1061 = vmatpush.bf16.msra.mxu0 0
        %1062 = vmatpush.bf16.msra.mxu0 %v1053
        %1063 = vmatpush.bf16.msra.mxu0 %v1052
        %1064 = vmatmul.bf16.gmra.mxu0 %v277
        %v1065 = vpop.f32.mrf.mxu0
        %v1066 = vadd.f32 0.0, %v1065
        %v1067 = vpop.f32.mrf.mxu0
        %1068 = vdwg.mxu0
        %v1069 = vpack.c.bf16 %v1016, %v1016
        %v1070 = vpack.c.bf16 %v1041, %v1041
        %v1072 = vsel %vm344, %v1069, 0
        %v1075 = vsel %vm344, %v1070, 0
        %1077 = vmatpush.bf16.xpose.msra.mxu0 0
        %1078 = vmatpush.bf16.xpose.msra.mxu0 0
        %1079 = vmatpush.bf16.xpose.msra.mxu0 0
        %1080 = vmatpush.bf16.xpose.msra.mxu0 0
        %1081 = vmatpush.bf16.xpose.msra.mxu0 0
        %1082 = vmatpush.bf16.xpose.msra.mxu0 0
        %1083 = vmatpush.bf16.xpose.msra.mxu0 0
        %1084 = vmatpush.bf16.xpose.msra.mxu0 %v1075
        %1085 = vmatmul.bf16.gmra.mxu0 %v1072
        %v1086 = vpop.f32.mrf.mxu0
        %v1087 = vadd.f32 0.0, %v1086
        %v1088 = vpop.f32.mrf.mxu0
        %1089 = vdwg.mxu0
        %v1090 = vsel %vm364, %v1087, -inf
        %1091 = vmax.xlane.f32.xlu0 %v1090
        %v1092 = vpop.xlane.xlu0 %1091
        %v1093 = vsub.f32 %v1087, %v1092
        %v1094 = vmul.f32 %v1093, 1.442695
        %v1095 = vpow.pop %v1094
        %v1096 = vsel %vm364, %v1095, 0.0
        %1097 = vadd.xlane.f32.xlu0 %v1096
        %v1098 = vpop.xlane.xlu0 %1097
        %v1099 = vrcp.pop %v1098
        %v1100 = vmul.f32 %v1098, %v1099
        %v1101 = vsub.f32 1.0, %v1100
        %v1102 = vmul.f32 %v1099, %v1101
        %v1103 = vadd.f32 %v1099, %v1102
        %vm1104 = vweird.f32 %v1098
        %vm1105 = vweird.f32 %v1099
        %vm1106 = vmor %vm1104, %vm1105
        %v1107 = vsel %vm1106, %v1099, %v1103
        %v1108 = vand.u32 2147483647, %v1098
        %vm1109 = vcmp.eq.f32.partialorder %v1108, 8.507059e+37
        %v1110 = vand.u32 %v1098, 2147483648
        %v1111 = vor.u32 1.1754944e-38, %v1110
        %v1112 = vsel %vm1109, %v1111, %v1107
        %v1113 = vmul.f32 %v1095, %v1112
        %v1114 = vpack.c.bf16 %v1113, %v1113
        %v1115 = vpack.c.bf16 %v1066, %v1066
        %v1117 = vsel %vm364, %v1114, 0
        %v1120 = vsel %vm394, %v1115, 0
        %1122 = vmatpush.bf16.msra.mxu0 0
        %1123 = vmatpush.bf16.msra.mxu0 0
        %1124 = vmatpush.bf16.msra.mxu0 0
        %1125 = vmatpush.bf16.msra.mxu0 0
        %1126 = vmatpush.bf16.msra.mxu0 0
        %1127 = vmatpush.bf16.msra.mxu0 0
        %1128 = vmatpush.bf16.msra.mxu0 0
        %1129 = vmatpush.bf16.msra.mxu0 %v1120
        %1130 = vmatmul.bf16.gmra.mxu0 %v1117
        %v1131 = vpop.f32.mrf.mxu0
        %v1132 = vadd.f32 0.0, %v1131
        %v1133 = vpop.f32.mrf.mxu0
        %1134 = vdwg.mxu0
        %v1135 = vld [vmem:[#allocation2] sm:$0xff]
        %v1136 = vpack.c.bf16 %v1132, %v1132
        %s1137 = scalar_lea.vmem %s4, 8
        %v1138 = vld [vmem:[%s1137] sm:$0x3]
        %v1140 = vsel %vm344, %v1136, 0
        %v1143 = vsel %vm417, %v1138, 0
        %1145 = vmatpush.bf16.msra.mxu0 0
        %1146 = vmatpush.bf16.msra.mxu0 0
        %1147 = vmatpush.bf16.msra.mxu0 0
        %1148 = vmatpush.bf16.msra.mxu0 0
        %1149 = vmatpush.bf16.msra.mxu0 0
        %1150 = vmatpush.bf16.msra.mxu0 0
        %1151 = vmatpush.bf16.msra.mxu0 0
        %1152 = vmatpush.bf16.msra.mxu0 %v1143
        %1153 = vmatmul.bf16.gmra.mxu0 %v1140
        %v1154 = vpop.f32.mrf.mxu0
        %v1155 = vadd.f32 0.0, %v1154
        %v1156 = vpop.f32.mrf.mxu0
        %1157 = vdwg.mxu0
        %v1158 = vadd.f32 %v1135, %v1155
        %1159 = vst.msk [vmem:[#allocation2] sm:$0xff] %vm250, %v1158
        %s1160 = scalar_lea.vmem %s1, 80
        %v1161 = vld [vmem:[%s1160] sm:$0xf]
        %v1162 = vld [vmem:[%s1160 + $0x4] sm:$0xf]
        %v1163 = vld [vmem:[%s1160 + $0x8] sm:$0xf]
        %v1164 = vld [vmem:[%s1160 + $0xc] sm:$0xf]
        %s1165 = scalar_lea.vmem %s2, 80
        %v1166 = vld [vmem:[%s1165] sm:$0xf]
        %v1167 = vld [vmem:[%s1165 + $0x4] sm:$0xf]
        %v1168 = vld [vmem:[%s1165 + $0x8] sm:$0xf]
        %v1169 = vld [vmem:[%s1165 + $0xc] sm:$0xf]
        %s1170 = scalar_lea.vmem %s3, 80
        %v1171 = vld [vmem:[%s1170] sm:$0xf]
        %v1172 = vld [vmem:[%s1170 + $0x4] sm:$0xf]
        %v1173 = vld [vmem:[%s1170 + $0x8] sm:$0xf]
        %v1174 = vld [vmem:[%s1170 + $0xc] sm:$0xf]
        %v1179 = vunpack.c.l.b16 %v1161
        %v1180 = vunpack.c.l.b16 %v1162
        %v1181 = vunpack.c.l.b16 %v1163
        %v1182 = vunpack.c.l.b16 %v1164
        %v1183 = vpack.c.b16 %v1180, %v1179
        %v1184 = vpack.c.b16 %v1182, %v1181
        %1187 = vmatpush.bf16.msra.mxu0 0
        %1188 = vmatpush.bf16.msra.mxu0 0
        %1189 = vmatpush.bf16.msra.mxu0 0
        %1190 = vmatpush.bf16.msra.mxu0 0
        %1191 = vmatpush.bf16.msra.mxu0 0
        %1192 = vmatpush.bf16.msra.mxu0 0
        %1193 = vmatpush.bf16.msra.mxu0 %v1184
        %1194 = vmatpush.bf16.msra.mxu0 %v1183
        %1195 = vmatmul.bf16.gmra.mxu0 %v277
        %v1196 = vpop.f32.mrf.mxu0
        %v1197 = vadd.f32 0.0, %v1196
        %v1198 = vpop.f32.mrf.mxu0
        %1199 = vdwg.mxu0
        %v1204 = vunpack.c.l.b16 %v1166
        %v1205 = vunpack.c.l.b16 %v1167
        %v1206 = vunpack.c.l.b16 %v1168
        %v1207 = vunpack.c.l.b16 %v1169
        %v1208 = vpack.c.b16 %v1205, %v1204
        %v1209 = vpack.c.b16 %v1207, %v1206
        %1212 = vmatpush.bf16.msra.mxu0 0
        %1213 = vmatpush.bf16.msra.mxu0 0
        %1214 = vmatpush.bf16.msra.mxu0 0
        %1215 = vmatpush.bf16.msra.mxu0 0
        %1216 = vmatpush.bf16.msra.mxu0 0
        %1217 = vmatpush.bf16.msra.mxu0 0
        %1218 = vmatpush.bf16.msra.mxu0 %v1209
        %1219 = vmatpush.bf16.msra.mxu0 %v1208
        %1220 = vmatmul.bf16.gmra.mxu0 %v277
        %v1221 = vpop.f32.mrf.mxu0
        %v1222 = vadd.f32 0.0, %v1221
        %v1223 = vpop.f32.mrf.mxu0
        %1224 = vdwg.mxu0
        %v1229 = vunpack.c.l.b16 %v1171
        %v1230 = vunpack.c.l.b16 %v1172
        %v1231 = vunpack.c.l.b16 %v1173
        %v1232 = vunpack.c.l.b16 %v1174
        %v1233 = vpack.c.b16 %v1230, %v1229
        %v1234 = vpack.c.b16 %v1232, %v1231
        %1237 = vmatpush.bf16.msra.mxu0 0
        %1238 = vmatpush.bf16.msra.mxu0 0
        %1239 = vmatpush.bf16.msra.mxu0 0
        %1240 = vmatpush.bf16.msra.mxu0 0
        %1241 = vmatpush.bf16.msra.mxu0 0
        %1242 = vmatpush.bf16.msra.mxu0 0
        %1243 = vmatpush.bf16.msra.mxu0 %v1234
        %1244 = vmatpush.bf16.msra.mxu0 %v1233
        %1245 = vmatmul.bf16.gmra.mxu0 %v277
        %v1246 = vpop.f32.mrf.mxu0
        %v1247 = vadd.f32 0.0, %v1246
        %v1248 = vpop.f32.mrf.mxu0
        %1249 = vdwg.mxu0
        %v1250 = vpack.c.bf16 %v1197, %v1197
        %v1251 = vpack.c.bf16 %v1222, %v1222
        %v1253 = vsel %vm344, %v1250, 0
        %v1256 = vsel %vm344, %v1251, 0
        %1258 = vmatpush.bf16.xpose.msra.mxu0 0
        %1259 = vmatpush.bf16.xpose.msra.mxu0 0
        %1260 = vmatpush.bf16.xpose.msra.mxu0 0
        %1261 = vmatpush.bf16.xpose.msra.mxu0 0
        %1262 = vmatpush.bf16.xpose.msra.mxu0 0
        %1263 = vmatpush.bf16.xpose.msra.mxu0 0
        %1264 = vmatpush.bf16.xpose.msra.mxu0 0
        %1265 = vmatpush.bf16.xpose.msra.mxu0 %v1256
        %1266 = vmatmul.bf16.gmra.mxu0 %v1253
        %v1267 = vpop.f32.mrf.mxu0
        %v1268 = vadd.f32 0.0, %v1267
        %v1269 = vpop.f32.mrf.mxu0
        %1270 = vdwg.mxu0
        %v1271 = vsel %vm364, %v1268, -inf
        %1272 = vmax.xlane.f32.xlu0 %v1271
        %v1273 = vpop.xlane.xlu0 %1272
        %v1274 = vsub.f32 %v1268, %v1273
        %v1275 = vmul.f32 %v1274, 1.442695
        %v1276 = vpow.pop %v1275
        %v1277 = vsel %vm364, %v1276, 0.0
        %1278 = vadd.xlane.f32.xlu0 %v1277
        %v1279 = vpop.xlane.xlu0 %1278
        %v1280 = vrcp.pop %v1279
        %v1281 = vmul.f32 %v1279, %v1280
        %v1282 = vsub.f32 1.0, %v1281
        %v1283 = vmul.f32 %v1280, %v1282
        %v1284 = vadd.f32 %v1280, %v1283
        %vm1285 = vweird.f32 %v1279
        %vm1286 = vweird.f32 %v1280
        %vm1287 = vmor %vm1285, %vm1286
        %v1288 = vsel %vm1287, %v1280, %v1284
        %v1289 = vand.u32 2147483647, %v1279
        %vm1290 = vcmp.eq.f32.partialorder %v1289, 8.507059e+37
        %v1291 = vand.u32 %v1279, 2147483648
        %v1292 = vor.u32 1.1754944e-38, %v1291
        %v1293 = vsel %vm1290, %v1292, %v1288
        %v1294 = vmul.f32 %v1276, %v1293
        %v1295 = vpack.c.bf16 %v1294, %v1294
        %v1296 = vpack.c.bf16 %v1247, %v1247
        %v1298 = vsel %vm364, %v1295, 0
        %v1301 = vsel %vm394, %v1296, 0
        %1303 = vmatpush.bf16.msra.mxu0 0
        %1304 = vmatpush.bf16.msra.mxu0 0
        %1305 = vmatpush.bf16.msra.mxu0 0
        %1306 = vmatpush.bf16.msra.mxu0 0
        %1307 = vmatpush.bf16.msra.mxu0 0
        %1308 = vmatpush.bf16.msra.mxu0 0
        %1309 = vmatpush.bf16.msra.mxu0 0
        %1310 = vmatpush.bf16.msra.mxu0 %v1301
        %1311 = vmatmul.bf16.gmra.mxu0 %v1298
        %v1312 = vpop.f32.mrf.mxu0
        %v1313 = vadd.f32 0.0, %v1312
        %v1314 = vpop.f32.mrf.mxu0
        %1315 = vdwg.mxu0
        %v1316 = vld [vmem:[#allocation2] sm:$0xff]
        %v1317 = vpack.c.bf16 %v1313, %v1313
        %s1318 = scalar_lea.vmem %s4, 10
        %v1319 = vld [vmem:[%s1318] sm:$0x3]
        %v1321 = vsel %vm344, %v1317, 0
        %v1324 = vsel %vm417, %v1319, 0
        %1326 = vmatpush.bf16.msra.mxu0 0
        %1327 = vmatpush.bf16.msra.mxu0 0
        %1328 = vmatpush.bf16.msra.mxu0 0
        %1329 = vmatpush.bf16.msra.mxu0 0
        %1330 = vmatpush.bf16.msra.mxu0 0
        %1331 = vmatpush.bf16.msra.mxu0 0
        %1332 = vmatpush.bf16.msra.mxu0 0
        %1333 = vmatpush.bf16.msra.mxu0 %v1324
        %1334 = vmatmul.bf16.gmra.mxu0 %v1321
        %v1335 = vpop.f32.mrf.mxu0
        %v1336 = vadd.f32 0.0, %v1335
        %v1337 = vpop.f32.mrf.mxu0
        %1338 = vdwg.mxu0
        %v1339 = vadd.f32 %v1316, %v1336
        %1340 = vst.msk [vmem:[#allocation2] sm:$0xff] %vm250, %v1339
        %s1341 = scalar_lea.vmem %s1, 96
        %v1342 = vld [vmem:[%s1341] sm:$0xf]
        %v1343 = vld [vmem:[%s1341 + $0x4] sm:$0xf]
        %v1344 = vld [vmem:[%s1341 + $0x8] sm:$0xf]
        %v1345 = vld [vmem:[%s1341 + $0xc] sm:$0xf]
        %s1346 = scalar_lea.vmem %s2, 96
        %v1347 = vld [vmem:[%s1346] sm:$0xf]
        %v1348 = vld [vmem:[%s1346 + $0x4] sm:$0xf]
        %v1349 = vld [vmem:[%s1346 + $0x8] sm:$0xf]
        %v1350 = vld [vmem:[%s1346 + $0xc] sm:$0xf]
        %s1351 = scalar_lea.vmem %s3, 96
        %v1352 = vld [vmem:[%s1351] sm:$0xf]
        %v1353 = vld [vmem:[%s1351 + $0x4] sm:$0xf]
        %v1354 = vld [vmem:[%s1351 + $0x8] sm:$0xf]
        %v1355 = vld [vmem:[%s1351 + $0xc] sm:$0xf]
        %v1360 = vunpack.c.l.b16 %v1342
        %v1361 = vunpack.c.l.b16 %v1343
        %v1362 = vunpack.c.l.b16 %v1344
        %v1363 = vunpack.c.l.b16 %v1345
        %v1364 = vpack.c.b16 %v1361, %v1360
        %v1365 = vpack.c.b16 %v1363, %v1362
        %1368 = vmatpush.bf16.msra.mxu0 0
        %1369 = vmatpush.bf16.msra.mxu0 0
        %1370 = vmatpush.bf16.msra.mxu0 0
        %1371 = vmatpush.bf16.msra.mxu0 0
        %1372 = vmatpush.bf16.msra.mxu0 0
        %1373 = vmatpush.bf16.msra.mxu0 0
        %1374 = vmatpush.bf16.msra.mxu0 %v1365
        %1375 = vmatpush.bf16.msra.mxu0 %v1364
        %1376 = vmatmul.bf16.gmra.mxu0 %v277
        %v1377 = vpop.f32.mrf.mxu0
        %v1378 = vadd.f32 0.0, %v1377
        %v1379 = vpop.f32.mrf.mxu0
        %1380 = vdwg.mxu0
        %v1385 = vunpack.c.l.b16 %v1347
        %v1386 = vunpack.c.l.b16 %v1348
        %v1387 = vunpack.c.l.b16 %v1349
        %v1388 = vunpack.c.l.b16 %v1350
        %v1389 = vpack.c.b16 %v1386, %v1385
        %v1390 = vpack.c.b16 %v1388, %v1387
        %1393 = vmatpush.bf16.msra.mxu0 0
        %1394 = vmatpush.bf16.msra.mxu0 0
        %1395 = vmatpush.bf16.msra.mxu0 0
        %1396 = vmatpush.bf16.msra.mxu0 0
        %1397 = vmatpush.bf16.msra.mxu0 0
        %1398 = vmatpush.bf16.msra.mxu0 0
        %1399 = vmatpush.bf16.msra.mxu0 %v1390
        %1400 = vmatpush.bf16.msra.mxu0 %v1389
        %1401 = vmatmul.bf16.gmra.mxu0 %v277
        %v1402 = vpop.f32.mrf.mxu0
        %v1403 = vadd.f32 0.0, %v1402
        %v1404 = vpop.f32.mrf.mxu0
        %1405 = vdwg.mxu0
        %v1410 = vunpack.c.l.b16 %v1352
        %v1411 = vunpack.c.l.b16 %v1353
        %v1412 = vunpack.c.l.b16 %v1354
        %v1413 = vunpack.c.l.b16 %v1355
        %v1414 = vpack.c.b16 %v1411, %v1410
        %v1415 = vpack.c.b16 %v1413, %v1412
        %1418 = vmatpush.bf16.msra.mxu0 0
        %1419 = vmatpush.bf16.msra.mxu0 0
        %1420 = vmatpush.bf16.msra.mxu0 0
        %1421 = vmatpush.bf16.msra.mxu0 0
        %1422 = vmatpush.bf16.msra.mxu0 0
        %1423 = vmatpush.bf16.msra.mxu0 0
        %1424 = vmatpush.bf16.msra.mxu0 %v1415
        %1425 = vmatpush.bf16.msra.mxu0 %v1414
        %1426 = vmatmul.bf16.gmra.mxu0 %v277
        %v1427 = vpop.f32.mrf.mxu0
        %v1428 = vadd.f32 0.0, %v1427
        %v1429 = vpop.f32.mrf.mxu0
        %1430 = vdwg.mxu0
        %v1431 = vpack.c.bf16 %v1378, %v1378
        %v1432 = vpack.c.bf16 %v1403, %v1403
        %v1434 = vsel %vm344, %v1431, 0
        %v1437 = vsel %vm344, %v1432, 0
        %1439 = vmatpush.bf16.xpose.msra.mxu0 0
        %1440 = vmatpush.bf16.xpose.msra.mxu0 0
        %1441 = vmatpush.bf16.xpose.msra.mxu0 0
        %1442 = vmatpush.bf16.xpose.msra.mxu0 0
        %1443 = vmatpush.bf16.xpose.msra.mxu0 0
        %1444 = vmatpush.bf16.xpose.msra.mxu0 0
        %1445 = vmatpush.bf16.xpose.msra.mxu0 0
        %1446 = vmatpush.bf16.xpose.msra.mxu0 %v1437
        %1447 = vmatmul.bf16.gmra.mxu0 %v1434
        %v1448 = vpop.f32.mrf.mxu0
        %v1449 = vadd.f32 0.0, %v1448
        %v1450 = vpop.f32.mrf.mxu0
        %1451 = vdwg.mxu0
        %v1452 = vsel %vm364, %v1449, -inf
        %1453 = vmax.xlane.f32.xlu0 %v1452
        %v1454 = vpop.xlane.xlu0 %1453
        %v1455 = vsub.f32 %v1449, %v1454
        %v1456 = vmul.f32 %v1455, 1.442695
        %v1457 = vpow.pop %v1456
        %v1458 = vsel %vm364, %v1457, 0.0
        %1459 = vadd.xlane.f32.xlu0 %v1458
        %v1460 = vpop.xlane.xlu0 %1459
        %v1461 = vrcp.pop %v1460
        %v1462 = vmul.f32 %v1460, %v1461
        %v1463 = vsub.f32 1.0, %v1462
        %v1464 = vmul.f32 %v1461, %v1463
        %v1465 = vadd.f32 %v1461, %v1464
        %vm1466 = vweird.f32 %v1460
        %vm1467 = vweird.f32 %v1461
        %vm1468 = vmor %vm1466, %vm1467
        %v1469 = vsel %vm1468, %v1461, %v1465
        %v1470 = vand.u32 2147483647, %v1460
        %vm1471 = vcmp.eq.f32.partialorder %v1470, 8.507059e+37
        %v1472 = vand.u32 %v1460, 2147483648
        %v1473 = vor.u32 1.1754944e-38, %v1472
        %v1474 = vsel %vm1471, %v1473, %v1469
        %v1475 = vmul.f32 %v1457, %v1474
        %v1476 = vpack.c.bf16 %v1475, %v1475
        %v1477 = vpack.c.bf16 %v1428, %v1428
        %v1479 = vsel %vm364, %v1476, 0
        %v1482 = vsel %vm394, %v1477, 0
        %1484 = vmatpush.bf16.msra.mxu0 0
        %1485 = vmatpush.bf16.msra.mxu0 0
        %1486 = vmatpush.bf16.msra.mxu0 0
        %1487 = vmatpush.bf16.msra.mxu0 0
        %1488 = vmatpush.bf16.msra.mxu0 0
        %1489 = vmatpush.bf16.msra.mxu0 0
        %1490 = vmatpush.bf16.msra.mxu0 0
        %1491 = vmatpush.bf16.msra.mxu0 %v1482
        %1492 = vmatmul.bf16.gmra.mxu0 %v1479
        %v1493 = vpop.f32.mrf.mxu0
        %v1494 = vadd.f32 0.0, %v1493
        %v1495 = vpop.f32.mrf.mxu0
        %1496 = vdwg.mxu0
        %v1497 = vld [vmem:[#allocation2] sm:$0xff]
        %v1498 = vpack.c.bf16 %v1494, %v1494
        %s1499 = scalar_lea.vmem %s4, 12
        %v1500 = vld [vmem:[%s1499] sm:$0x3]
        %v1502 = vsel %vm344, %v1498, 0
        %v1505 = vsel %vm417, %v1500, 0
        %1507 = vmatpush.bf16.msra.mxu0 0
        %1508 = vmatpush.bf16.msra.mxu0 0
        %1509 = vmatpush.bf16.msra.mxu0 0
        %1510 = vmatpush.bf16.msra.mxu0 0
        %1511 = vmatpush.bf16.msra.mxu0 0
        %1512 = vmatpush.bf16.msra.mxu0 0
        %1513 = vmatpush.bf16.msra.mxu0 0
        %1514 = vmatpush.bf16.msra.mxu0 %v1505
        %1515 = vmatmul.bf16.gmra.mxu0 %v1502
        %v1516 = vpop.f32.mrf.mxu0
        %v1517 = vadd.f32 0.0, %v1516
        %v1518 = vpop.f32.mrf.mxu0
        %1519 = vdwg.mxu0
        %v1520 = vadd.f32 %v1497, %v1517
        %1521 = vst.msk [vmem:[#allocation2] sm:$0xff] %vm250, %v1520
        %s1522 = scalar_lea.vmem %s1, 112
        %v1523 = vld [vmem:[%s1522] sm:$0xf]
        %v1524 = vld [vmem:[%s1522 + $0x4] sm:$0xf]
        %v1525 = vld [vmem:[%s1522 + $0x8] sm:$0xf]
        %v1526 = vld [vmem:[%s1522 + $0xc] sm:$0xf]
        %s1527 = scalar_lea.vmem %s2, 112
        %v1528 = vld [vmem:[%s1527] sm:$0xf]
        %v1529 = vld [vmem:[%s1527 + $0x4] sm:$0xf]
        %v1530 = vld [vmem:[%s1527 + $0x8] sm:$0xf]
        %v1531 = vld [vmem:[%s1527 + $0xc] sm:$0xf]
        %s1532 = scalar_lea.vmem %s3, 112
        %v1533 = vld [vmem:[%s1532] sm:$0xf]
        %v1534 = vld [vmem:[%s1532 + $0x4] sm:$0xf]
        %v1535 = vld [vmem:[%s1532 + $0x8] sm:$0xf]
        %v1536 = vld [vmem:[%s1532 + $0xc] sm:$0xf]
        %v1541 = vunpack.c.l.b16 %v1523
        %v1542 = vunpack.c.l.b16 %v1524
        %v1543 = vunpack.c.l.b16 %v1525
        %v1544 = vunpack.c.l.b16 %v1526
        %v1545 = vpack.c.b16 %v1542, %v1541
        %v1546 = vpack.c.b16 %v1544, %v1543
        %1549 = vmatpush.bf16.msra.mxu0 0
        %1550 = vmatpush.bf16.msra.mxu0 0
        %1551 = vmatpush.bf16.msra.mxu0 0
        %1552 = vmatpush.bf16.msra.mxu0 0
        %1553 = vmatpush.bf16.msra.mxu0 0
        %1554 = vmatpush.bf16.msra.mxu0 0
        %1555 = vmatpush.bf16.msra.mxu0 %v1546
        %1556 = vmatpush.bf16.msra.mxu0 %v1545
        %1557 = vmatmul.bf16.gmra.mxu0 %v277
        %v1558 = vpop.f32.mrf.mxu0
        %v1559 = vadd.f32 0.0, %v1558
        %v1560 = vpop.f32.mrf.mxu0
        %1561 = vdwg.mxu0
        %v1566 = vunpack.c.l.b16 %v1528
        %v1567 = vunpack.c.l.b16 %v1529
        %v1568 = vunpack.c.l.b16 %v1530
        %v1569 = vunpack.c.l.b16 %v1531
        %v1570 = vpack.c.b16 %v1567, %v1566
        %v1571 = vpack.c.b16 %v1569, %v1568
        %1574 = vmatpush.bf16.msra.mxu0 0
        %1575 = vmatpush.bf16.msra.mxu0 0
        %1576 = vmatpush.bf16.msra.mxu0 0
        %1577 = vmatpush.bf16.msra.mxu0 0
        %1578 = vmatpush.bf16.msra.mxu0 0
        %1579 = vmatpush.bf16.msra.mxu0 0
        %1580 = vmatpush.bf16.msra.mxu0 %v1571
        %1581 = vmatpush.bf16.msra.mxu0 %v1570
        %1582 = vmatmul.bf16.gmra.mxu0 %v277
        %v1583 = vpop.f32.mrf.mxu0
        %v1584 = vadd.f32 0.0, %v1583
        %v1585 = vpop.f32.mrf.mxu0
        %1586 = vdwg.mxu0
        %v1591 = vunpack.c.l.b16 %v1533
        %v1592 = vunpack.c.l.b16 %v1534
        %v1593 = vunpack.c.l.b16 %v1535
        %v1594 = vunpack.c.l.b16 %v1536
        %v1595 = vpack.c.b16 %v1592, %v1591
        %v1596 = vpack.c.b16 %v1594, %v1593
        %1599 = vmatpush.bf16.msra.mxu0 0
        %1600 = vmatpush.bf16.msra.mxu0 0
        %1601 = vmatpush.bf16.msra.mxu0 0
        %1602 = vmatpush.bf16.msra.mxu0 0
        %1603 = vmatpush.bf16.msra.mxu0 0
        %1604 = vmatpush.bf16.msra.mxu0 0
        %1605 = vmatpush.bf16.msra.mxu0 %v1596
        %1606 = vmatpush.bf16.msra.mxu0 %v1595
        %1607 = vmatmul.bf16.gmra.mxu0 %v277
        %v1608 = vpop.f32.mrf.mxu0
        %v1609 = vadd.f32 0.0, %v1608
        %v1610 = vpop.f32.mrf.mxu0
        %1611 = vdwg.mxu0
        %v1612 = vpack.c.bf16 %v1559, %v1559
        %v1613 = vpack.c.bf16 %v1584, %v1584
        %v1615 = vsel %vm344, %v1612, 0
        %v1618 = vsel %vm344, %v1613, 0
        %1620 = vmatpush.bf16.xpose.msra.mxu0 0
        %1621 = vmatpush.bf16.xpose.msra.mxu0 0
        %1622 = vmatpush.bf16.xpose.msra.mxu0 0
        %1623 = vmatpush.bf16.xpose.msra.mxu0 0
        %1624 = vmatpush.bf16.xpose.msra.mxu0 0
        %1625 = vmatpush.bf16.xpose.msra.mxu0 0
        %1626 = vmatpush.bf16.xpose.msra.mxu0 0
        %1627 = vmatpush.bf16.xpose.msra.mxu0 %v1618
        %1628 = vmatmul.bf16.gmra.mxu0 %v1615
        %v1629 = vpop.f32.mrf.mxu0
        %v1630 = vadd.f32 0.0, %v1629
        %v1631 = vpop.f32.mrf.mxu0
        %1632 = vdwg.mxu0
        %v1633 = vsel %vm364, %v1630, -inf
        %1634 = vmax.xlane.f32.xlu0 %v1633
        %v1635 = vpop.xlane.xlu0 %1634
        %v1636 = vsub.f32 %v1630, %v1635
        %v1637 = vmul.f32 %v1636, 1.442695
        %v1638 = vpow.pop %v1637
        %v1639 = vsel %vm364, %v1638, 0.0
        %1640 = vadd.xlane.f32.xlu0 %v1639
        %v1641 = vpop.xlane.xlu0 %1640
        %v1642 = vrcp.pop %v1641
        %v1643 = vmul.f32 %v1641, %v1642
        %v1644 = vsub.f32 1.0, %v1643
        %v1645 = vmul.f32 %v1642, %v1644
        %v1646 = vadd.f32 %v1642, %v1645
        %vm1647 = vweird.f32 %v1641
        %vm1648 = vweird.f32 %v1642
        %vm1649 = vmor %vm1647, %vm1648
        %v1650 = vsel %vm1649, %v1642, %v1646
        %v1651 = vand.u32 2147483647, %v1641
        %vm1652 = vcmp.eq.f32.partialorder %v1651, 8.507059e+37
        %v1653 = vand.u32 %v1641, 2147483648
        %v1654 = vor.u32 1.1754944e-38, %v1653
        %v1655 = vsel %vm1652, %v1654, %v1650
        %v1656 = vmul.f32 %v1638, %v1655
        %v1657 = vpack.c.bf16 %v1656, %v1656
        %v1658 = vpack.c.bf16 %v1609, %v1609
        %v1660 = vsel %vm364, %v1657, 0
        %v1663 = vsel %vm394, %v1658, 0
        %1665 = vmatpush.bf16.msra.mxu0 0
        %1666 = vmatpush.bf16.msra.mxu0 0
        %1667 = vmatpush.bf16.msra.mxu0 0
        %1668 = vmatpush.bf16.msra.mxu0 0
        %1669 = vmatpush.bf16.msra.mxu0 0
        %1670 = vmatpush.bf16.msra.mxu0 0
        %1671 = vmatpush.bf16.msra.mxu0 0
        %1672 = vmatpush.bf16.msra.mxu0 %v1663
        %1673 = vmatmul.bf16.gmra.mxu0 %v1660
        %v1674 = vpop.f32.mrf.mxu0
        %v1675 = vadd.f32 0.0, %v1674
        %v1676 = vpop.f32.mrf.mxu0
        %1677 = vdwg.mxu0
        %v1678 = vld [vmem:[#allocation2] sm:$0xff]
        %v1679 = vpack.c.bf16 %v1675, %v1675
        %s1680 = scalar_lea.vmem %s4, 14
        %v1681 = vld [vmem:[%s1680] sm:$0x3]
        %v1683 = vsel %vm344, %v1679, 0
        %v1686 = vsel %vm417, %v1681, 0
        %1688 = vmatpush.bf16.msra.mxu0 0
        %1689 = vmatpush.bf16.msra.mxu0 0
        %1690 = vmatpush.bf16.msra.mxu0 0
        %1691 = vmatpush.bf16.msra.mxu0 0
        %1692 = vmatpush.bf16.msra.mxu0 0
        %1693 = vmatpush.bf16.msra.mxu0 0
        %1694 = vmatpush.bf16.msra.mxu0 0
        %1695 = vmatpush.bf16.msra.mxu0 %v1686
        %1696 = vmatmul.bf16.gmra.mxu0 %v1683
        %v1697 = vpop.f32.mrf.mxu0
        %v1698 = vadd.f32 0.0, %v1697
        %v1699 = vpop.f32.mrf.mxu0
        %1700 = vdwg.mxu0
        %v1701 = vadd.f32 %v1678, %v1698
        %1702 = vst.msk [vmem:[#allocation2] sm:$0xff] %vm250, %v1701
        %v1703 = vld [vmem:[#allocation2] sm:$0xff]
        %v1704 = vld [vmem:[%s5] sm:$0x1]
        %v1706 = vperm.slane %v1704, 0
        %v1708 = vadd.f32 %v1703, %v1706
        %1709 = vst.msk [vmem:[%s242] sm:$0xff] %vm250, %v1708
        %s1710 = sand.u32 %s159, 1
        %s1711 = scalar_lea.sflag [#allocation4], %s1710
        %s1712 = sand.u32 %s159, 1
        %s1713 = smul.addr %s1712, 8
        %s1714 = scalar_lea.vmem [#allocation3], %s1713
        // Predicated region
        $region45: #{tpu_custom_call.1} parent=43 // pred_check
          %p1715 = pneg %p169
        $region46: #{tpu_custom_call.1} parent=43 // pred_check_branch
          %1717 = sbr.rel (%p1715) target = $region48
        $region47: #{tpu_custom_call.1} parent=43 // pred_region
          %1719 = vsyncadd %s1711, 0
          %s1720 = smul.addr %s20, 8
          %s1721 = scalar_lea.hbm %s6, %s1720
          %s1723 = sshll.u32 %s1714, 4
          %s1724 = int_to_ptr.vmem [resolvable:$true] %s1723
          %s1725 = sshll.u32 %s1721, 4
          %s1726 = int_to_ptr.hbm [resolvable:$true] %s1725
          %1728 = dma.vmem_to_hbm [thread:$0]  %s1724, 128, %s1726, %s1711
        $region48: #{tpu_custom_call.1} parent=43 // pred_fallthru
          _
      $region44: #{tpu_custom_call.1} parent=5 // pred_fallthru
        _
      %p1729 = scmp.le.s32.totalorder 2, %s15
      // Predicated region
      $region49: #{tpu_custom_call.1} parent=5 // pred_check
        %p1730 = pneg %p1729
      $region50: #{tpu_custom_call.1} parent=5 // pred_check_branch
        %1732 = sbr.rel (%p1730) target = $region52
      $region51: #{tpu_custom_call.1} parent=5 // pred_region
        %s1733 = ssub.s32 %s15, 2
        // Predicated region
        $region53: #{tpu_custom_call.1} parent=51 // pred_check
          %p1734 = pneg %p175
        $region54: #{tpu_custom_call.1} parent=51 // pred_check_branch
          %1736 = sbr.rel (%p1734) target = $region56
        $region55: #{tpu_custom_call.1} parent=51 // pred_region
          %s1737 = sand.u32 %s160, 1
          %s1738 = scalar_lea.sflag [#allocation4], %s1737
          %s1739 = sand.u32 %s160, 1
          %s1740 = smul.addr %s1739, 8
          %s1741 = scalar_lea.vmem [#allocation3], %s1740
          %1743 = dma.done %s1738, 128
        $region56: #{tpu_custom_call.1} parent=51 // pred_fallthru
          _
      $region52: #{tpu_custom_call.1} parent=5 // pred_fallthru
        _
    $region6: #{tpu_custom_call.1} parent=1 // loop_footer
      %s19 = sadd.s32 1, %s15
    $region7: #{tpu_custom_call.1} parent=1 // loop_footer_branch
      %14 = sbr.rel target = $region3
    $region8: #{tpu_custom_call.1} parent=1 // loop_exit
      _
    %1744 = vsyncpa [#allocation4], 1
    %s1745 = scalar_lea.sflag [#allocation4], 1
    %1746 = vsyncpa %s1745, 1

</llo_original>
